<compile_context>
chip_gen: v5e
topology: v5e:2x2
jax: 0.10.0
libtpu: 0.0.40
codegen_flags: <defaults>
</compile_context>

<pallas_src>
import functools

import jax
import jax.numpy as jnp
from jax import lax
from jax.experimental import pallas as pl
from jax.experimental.pallas import tpu as pltpu


# ----------------------------------------------------------------------------
# Fused multi-head-attention kernel (one batch element per grid step)
# ----------------------------------------------------------------------------
def _mha_kernel(q_ref, k_ref, v_ref,
                wq_ref, wk_ref, wv_ref, wo_ref,
                bq_ref, bk_ref, bv_ref, bo_ref,
                o_ref, attn_ref,
                *, n_heads, head_dim, scale):
    f32 = jnp.float32
    Sq = q_ref.shape[0]
    H = wo_ref.shape[1]

    q_in = q_ref[...].astype(f32)
    k_in = k_ref[...].astype(f32)
    v_in = v_ref[...].astype(f32)

    # ---- fused Q/K/V projections: three MXU matmuls, a single kernel launch ----
    Q = jnp.dot(q_in, wq_ref[...], preferred_element_type=f32) + bq_ref[...]
    K = jnp.dot(k_in, wk_ref[...], preferred_element_type=f32) + bk_ref[...]
    V = jnp.dot(v_in, wv_ref[...], preferred_element_type=f32) + bv_ref[...]

    # Fold 1/scale into Q: touches Sq*H elements instead of Sq*Sk per head.
    Q = Q * jnp.float32(1.0 / scale)

    wo = wo_ref[...].astype(f32)

    # Output-projection accumulator lives in vregs/VMEM; bias added once at the end.
    acc = jnp.zeros((Sq, H), f32)

    # Static (unrolled) loop over heads; head split is pure static lane slicing,
    # no reshapes/transposes and no HBM traffic.
    for h in range(n_heads):
        lo = h * head_dim
        hi = lo + head_dim
        qh = Q[:, lo:hi]                       # (Sq, hd)
        kh = K[:, lo:hi]                       # (Sk, hd)
        vh = V[:, lo:hi]                       # (Sk, hd)

        # energy = qh @ kh.T without an explicit XLU transpose of K.
        energy = lax.dot_general(qh, kh, (((1,), (1,)), ((), ())),
                                 preferred_element_type=f32)

        m = jnp.max(energy, axis=-1, keepdims=True)
        p = jnp.exp(energy - m)
        denom = jnp.sum(p, axis=-1, keepdims=True)
        # approx=True would move this onto the EUP slot (~2^-12 rel. err); kept
        # exact to preserve the 1e-4 parity with the PyTorch-style reference.
        attn_h = p * pl.reciprocal(denom, approx=False)

        attn_ref[h] = attn_h.astype(attn_ref.dtype)

        ctx_h = jnp.dot(attn_h, vh, preferred_element_type=f32)        # (Sq, hd)
        # Fused output projection:  ctx_flat @ wo == sum_h ctx_h @ wo[lo:hi, :]
        acc = acc + jnp.dot(ctx_h, wo[lo:hi, :], preferred_element_type=f32)

    o_ref[...] = (acc + bo_ref[...]).astype(o_ref.dtype)


# ----------------------------------------------------------------------------
# Module wrapper
# ----------------------------------------------------------------------------
def multi_head_attention(params, query, key, value, n_heads, mask=None):
    assert mask is None  # TODO(synk): mask branch not wired into the kernel
    B, Sq, H = query.shape
    Sk = key.shape[1]
    hd = H // n_heads
    scale = float(hd) ** 0.5

    kernel = functools.partial(_mha_kernel, n_heads=n_heads, head_dim=hd, scale=scale)

    bq = params["bq"].reshape(1, H)
    bk = params["bk"].reshape(1, H)
    bv = params["bv"].reshape(1, H)
    bo = params["bo"].reshape(1, H)

    out, attn = pl.pallas_call(
        kernel,
        grid=(B,),
        in_specs=[
            pl.BlockSpec((None, Sq, H), lambda b: (b, 0, 0)),   # query
            pl.BlockSpec((None, Sk, H), lambda b: (b, 0, 0)),   # key
            pl.BlockSpec((None, Sk, H), lambda b: (b, 0, 0)),   # value
            pl.BlockSpec((H, H), lambda b: (0, 0)),             # wq (resident)
            pl.BlockSpec((H, H), lambda b: (0, 0)),             # wk
            pl.BlockSpec((H, H), lambda b: (0, 0)),             # wv
            pl.BlockSpec((H, H), lambda b: (0, 0)),             # wo
            pl.BlockSpec((1, H), lambda b: (0, 0)),             # bq
            pl.BlockSpec((1, H), lambda b: (0, 0)),             # bk
            pl.BlockSpec((1, H), lambda b: (0, 0)),             # bv
            pl.BlockSpec((1, H), lambda b: (0, 0)),             # bo
        ],
        out_specs=[
            pl.BlockSpec((None, Sq, H), lambda b: (b, 0, 0)),               # output (lane-dense slab)
            pl.BlockSpec((None, n_heads, Sq, Sk), lambda b: (b, 0, 0, 0)),  # attention probs
        ],
        out_shape=[
            jax.ShapeDtypeStruct((B, Sq, H), query.dtype),
            jax.ShapeDtypeStruct((B, n_heads, Sq, Sk), jnp.float32),
        ],
        compiler_params=pltpu.CompilerParams(
            dimension_semantics=("parallel",)),
    )(query, key, value,
      params["wq"], params["wk"], params["wv"], params["wo"],
      bq, bk, bv, bo)
    return out, attn


# ----------------------------------------------------------------------------
# Pure-JAX reference (mirrors the PyTorch module, for verification)
# ----------------------------------------------------------------------------
def reference(params, query, key, value, n_heads):
    B, Sq, H = query.shape
    Sk = key.shape[1]
    hd = H // n_heads
    scale = jnp.sqrt(jnp.float32(hd))

    Q = (query @ params["wq"] + params["bq"]).reshape(B, Sq, n_heads, hd).transpose(0, 2, 1, 3)
    K = (key @ params["wk"] + params["bk"]).reshape(B, Sk, n_heads, hd).transpose(0, 2, 1, 3)
    V = (value @ params["wv"] + params["bv"]).reshape(B, Sk, n_heads, hd).transpose(0, 2, 1, 3)

    energy = jnp.einsum("bhqd,bhkd->bhqk", Q, K) / scale
    attn = jax.nn.softmax(energy, axis=-1)
    x = jnp.einsum("bhqk,bhkd->bhqd", attn, V)
    x = x.transpose(0, 2, 1, 3).reshape(B, Sq, H)
    x = x @ params["wo"] + params["bo"]
    return x, attn


if __name__ == "__main__":
    B, S, H, NH = 2, 8, 32, 4  # batch, seq, hid_dim, n_heads  (head_dim = 8)
    key0 = jax.random.PRNGKey(0)
    ks = jax.random.split(key0, 11)

    def init_w(k):
        return jax.random.normal(k, (H, H), jnp.float32) * 0.05

    params = {
        "wq": init_w(ks[0]), "bq": jax.random.normal(ks[1], (H,), jnp.float32) * 0.01,
        "wk": init_w(ks[2]), "bk": jax.random.normal(ks[3], (H,), jnp.float32) * 0.01,
        "wv": init_w(ks[4]), "bv": jax.random.normal(ks[5], (H,), jnp.float32) * 0.01,
        "wo": init_w(ks[6]), "bo": jax.random.normal(ks[7], (H,), jnp.float32) * 0.01,
    }

    query = jax.random.normal(ks[8], (B, S, H), jnp.float32)
    key_t = jax.random.normal(ks[9], (B, S, H), jnp.float32)
    value = jax.random.normal(ks[10], (B, S, H), jnp.float32)

    out, attn = multi_head_attention(params, query, key_t, value, NH)
    out = jax.block_until_ready(out)
    attn = jax.block_until_ready(attn)

    ref_out, ref_attn = reference(params, query, key_t, value, NH)
    assert out.shape == (B, S, H) and attn.shape == (B, NH, S, S)
    assert jnp.allclose(out, ref_out, atol=1e-4, rtol=1e-4)
    assert jnp.allclose(attn, ref_attn, atol=1e-4, rtol=1e-4)

    print("KERNEL_OK")
</pallas_src>

<mosaic_0001>
module attributes {stable_mosaic.version = 11 : i64} {
  func.func @_mha_kernel(%arg0: i32, %arg1: memref<1x8x32xf32, #tpu.memory_space<vmem>>, %arg2: memref<1x8x32xf32, #tpu.memory_space<vmem>>, %arg3: memref<1x8x32xf32, #tpu.memory_space<vmem>>, %arg4: memref<32x32xf32, #tpu.memory_space<vmem>>, %arg5: memref<32x32xf32, #tpu.memory_space<vmem>>, %arg6: memref<32x32xf32, #tpu.memory_space<vmem>>, %arg7: memref<32x32xf32, #tpu.memory_space<vmem>>, %arg8: memref<1x32xf32, #tpu.memory_space<vmem>>, %arg9: memref<1x32xf32, #tpu.memory_space<vmem>>, %arg10: memref<1x32xf32, #tpu.memory_space<vmem>>, %arg11: memref<1x32xf32, #tpu.memory_space<vmem>>, %arg12: memref<1x8x32xf32, #tpu.memory_space<vmem>>, %arg13: memref<1x4x8x8xf32, #tpu.memory_space<vmem>>) attributes {dimension_semantics = [#tpu.dimension_semantics<parallel>], iteration_bounds = array<i64: 2>, scalar_prefetch = 0 : i64, scratch_operands = 0 : i64, tpu.core_type = #tpu.core_type<tc>, window_params = [{transform_indices = @transform_0, window_bounds = array<i64: 1, 8, 32>}, {transform_indices = @transform_1, window_bounds = array<i64: 1, 8, 32>}, {transform_indices = @transform_2, window_bounds = array<i64: 1, 8, 32>}, {pipeline_mode = #tpu.pipeline_mode<synchronous>, transform_indices = @transform_3, window_bounds = array<i64: 32, 32>}, {pipeline_mode = #tpu.pipeline_mode<synchronous>, transform_indices = @transform_4, window_bounds = array<i64: 32, 32>}, {pipeline_mode = #tpu.pipeline_mode<synchronous>, transform_indices = @transform_5, window_bounds = array<i64: 32, 32>}, {pipeline_mode = #tpu.pipeline_mode<synchronous>, transform_indices = @transform_6, window_bounds = array<i64: 32, 32>}, {pipeline_mode = #tpu.pipeline_mode<synchronous>, transform_indices = @transform_7, window_bounds = array<i64: 1, 32>}, {pipeline_mode = #tpu.pipeline_mode<synchronous>, transform_indices = @transform_8, window_bounds = array<i64: 1, 32>}, {pipeline_mode = #tpu.pipeline_mode<synchronous>, transform_indices = @transform_9, window_bounds = array<i64: 1, 32>}, {pipeline_mode = #tpu.pipeline_mode<synchronous>, transform_indices = @transform_10, window_bounds = array<i64: 1, 32>}, {transform_indices = @transform_11, window_bounds = array<i64: 1, 8, 32>}, {transform_indices = @transform_12, window_bounds = array<i64: 1, 4, 8, 8>}]} {
    %c0 = arith.constant 0 : index
    %c0_0 = arith.constant 0 : index
    %c0_1 = arith.constant 0 : index
    %0 = vector.load %arg1[%c0, %c0_0, %c0_1] : memref<1x8x32xf32, #tpu.memory_space<vmem>>, vector<1x8x32xf32>
    %1 = vector.shape_cast %0 : vector<1x8x32xf32> to vector<8x32xf32>
    %c0_2 = arith.constant 0 : index
    %c0_3 = arith.constant 0 : index
    %c0_4 = arith.constant 0 : index
    %2 = vector.load %arg2[%c0_2, %c0_3, %c0_4] : memref<1x8x32xf32, #tpu.memory_space<vmem>>, vector<1x8x32xf32>
    %3 = vector.shape_cast %2 : vector<1x8x32xf32> to vector<8x32xf32>
    %c0_5 = arith.constant 0 : index
    %c0_6 = arith.constant 0 : index
    %c0_7 = arith.constant 0 : index
    %4 = vector.load %arg3[%c0_5, %c0_6, %c0_7] : memref<1x8x32xf32, #tpu.memory_space<vmem>>, vector<1x8x32xf32>
    %5 = vector.shape_cast %4 : vector<1x8x32xf32> to vector<8x32xf32>
    %c0_8 = arith.constant 0 : index
    %c0_9 = arith.constant 0 : index
    %6 = vector.load %arg4[%c0_8, %c0_9] : memref<32x32xf32, #tpu.memory_space<vmem>>, vector<32x32xf32>
    %cst = arith.constant dense<0.000000e+00> : vector<8x32xf32>
    %7 = tpu.matmul %1, %6, %cst {dimension_numbers = #tpu.dot_dimension_numbers<[1], [0], [0], [1], [0, 0, 1, 1], [], []>} : vector<8x32xf32>, vector<32x32xf32>, vector<8x32xf32> -> vector<8x32xf32>
    %c0_10 = arith.constant 0 : index
    %c0_11 = arith.constant 0 : index
    %8 = vector.load %arg8[%c0_10, %c0_11] : memref<1x32xf32, #tpu.memory_space<vmem>>, vector<1x32xf32>
    %9 = vector.broadcast %8 : vector<1x32xf32> to vector<8x32xf32>
    %10 = arith.addf %7, %9 : vector<8x32xf32>
    %c0_12 = arith.constant 0 : index
    %c0_13 = arith.constant 0 : index
    %11 = vector.load %arg5[%c0_12, %c0_13] : memref<32x32xf32, #tpu.memory_space<vmem>>, vector<32x32xf32>
    %cst_14 = arith.constant dense<0.000000e+00> : vector<8x32xf32>
    %12 = tpu.matmul %3, %11, %cst_14 {dimension_numbers = #tpu.dot_dimension_numbers<[1], [0], [0], [1], [0, 0, 1, 1], [], []>} : vector<8x32xf32>, vector<32x32xf32>, vector<8x32xf32> -> vector<8x32xf32>
    %c0_15 = arith.constant 0 : index
    %c0_16 = arith.constant 0 : index
    %13 = vector.load %arg9[%c0_15, %c0_16] : memref<1x32xf32, #tpu.memory_space<vmem>>, vector<1x32xf32>
    %14 = vector.broadcast %13 : vector<1x32xf32> to vector<8x32xf32>
    %15 = arith.addf %12, %14 : vector<8x32xf32>
    %c0_17 = arith.constant 0 : index
    %c0_18 = arith.constant 0 : index
    %16 = vector.load %arg6[%c0_17, %c0_18] : memref<32x32xf32, #tpu.memory_space<vmem>>, vector<32x32xf32>
    %cst_19 = arith.constant dense<0.000000e+00> : vector<8x32xf32>
    %17 = tpu.matmul %5, %16, %cst_19 {dimension_numbers = #tpu.dot_dimension_numbers<[1], [0], [0], [1], [0, 0, 1, 1], [], []>} : vector<8x32xf32>, vector<32x32xf32>, vector<8x32xf32> -> vector<8x32xf32>
    %c0_20 = arith.constant 0 : index
    %c0_21 = arith.constant 0 : index
    %18 = vector.load %arg10[%c0_20, %c0_21] : memref<1x32xf32, #tpu.memory_space<vmem>>, vector<1x32xf32>
    %19 = vector.broadcast %18 : vector<1x32xf32> to vector<8x32xf32>
    %20 = arith.addf %17, %19 : vector<8x32xf32>
    %cst_22 = arith.constant 0.353553385 : f32
    %21 = vector.broadcast %cst_22 : f32 to vector<8x32xf32>
    %22 = arith.mulf %10, %21 : vector<8x32xf32>
    %c0_23 = arith.constant 0 : index
    %c0_24 = arith.constant 0 : index
    %23 = vector.load %arg7[%c0_23, %c0_24] : memref<32x32xf32, #tpu.memory_space<vmem>>, vector<32x32xf32>
    %cst_25 = arith.constant 0.000000e+00 : f32
    %24 = vector.broadcast %cst_25 : f32 to vector<8x32xf32>
    %25 = vector.extract_strided_slice %22 {offsets = [0, 0], sizes = [8, 8], strides = [1, 1]} : vector<8x32xf32> to vector<8x8xf32>
    %26 = vector.extract_strided_slice %15 {offsets = [0, 0], sizes = [8, 8], strides = [1, 1]} : vector<8x32xf32> to vector<8x8xf32>
    %27 = vector.extract_strided_slice %20 {offsets = [0, 0], sizes = [8, 8], strides = [1, 1]} : vector<8x32xf32> to vector<8x8xf32>
    %cst_26 = arith.constant dense<0.000000e+00> : vector<8x8xf32>
    %28 = tpu.matmul %25, %26, %cst_26 {dimension_numbers = #tpu.dot_dimension_numbers<[1], [1], [0], [0], [0, 0, 1, 0], [], []>} : vector<8x8xf32>, vector<8x8xf32>, vector<8x8xf32> -> vector<8x8xf32>
    %cst_27 = arith.constant dense<0xFF800000> : vector<8xf32>
    %29 = vector.multi_reduction <maximumf>, %28, %cst_27 [1] : vector<8x8xf32> to vector<8xf32>
    %30 = vector.shape_cast %29 : vector<8xf32> to vector<8x1xf32>
    %31 = vector.broadcast %30 : vector<8x1xf32> to vector<8x8xf32>
    %32 = arith.subf %28, %31 : vector<8x8xf32>
    %33 = math.exp %32 : vector<8x8xf32>
    %cst_28 = arith.constant dense<0.000000e+00> : vector<8xf32>
    %34 = vector.multi_reduction <add>, %33, %cst_28 [1] : vector<8x8xf32> to vector<8xf32>
    %35 = vector.shape_cast %34 : vector<8xf32> to vector<8x1xf32>
    %36 = tpu.reciprocal %35 : vector<8x1xf32> -> vector<8x1xf32>
    %37 = vector.broadcast %36 : vector<8x1xf32> to vector<8x8xf32>
    %38 = arith.mulf %33, %37 : vector<8x8xf32>
    %c0_29 = arith.constant 0 : index
    %c0_30 = arith.constant 0 : index
    %c0_31 = arith.constant 0 : index
    %c0_32 = arith.constant 0 : index
    %39 = vector.load %arg13[%c0_29, %c0_30, %c0_31, %c0_32] : memref<1x4x8x8xf32, #tpu.memory_space<vmem>>, vector<1x1x8x8xf32>
    %40 = vector.shape_cast %39 : vector<1x1x8x8xf32> to vector<8x8xf32>
    %41 = vector.shape_cast %38 : vector<8x8xf32> to vector<1x1x8x8xf32>
    tpu.vector_store %arg13[%c0_29, %c0_30, %c0_31, %c0_32], %41 {strides = array<i32>} : memref<1x4x8x8xf32, #tpu.memory_space<vmem>>, vector<1x1x8x8xf32>,
    %cst_33 = arith.constant dense<0.000000e+00> : vector<8x8xf32>
    %42 = tpu.matmul %38, %27, %cst_33 {dimension_numbers = #tpu.dot_dimension_numbers<[1], [0], [0], [1], [0, 0, 1, 1], [], []>} : vector<8x8xf32>, vector<8x8xf32>, vector<8x8xf32> -> vector<8x8xf32>
    %43 = vector.extract_strided_slice %23 {offsets = [0, 0], sizes = [8, 32], strides = [1, 1]} : vector<32x32xf32> to vector<8x32xf32>
    %cst_34 = arith.constant dense<0.000000e+00> : vector<8x32xf32>
    %44 = tpu.matmul %42, %43, %cst_34 {dimension_numbers = #tpu.dot_dimension_numbers<[1], [0], [0], [1], [0, 0, 1, 1], [], []>} : vector<8x8xf32>, vector<8x32xf32>, vector<8x32xf32> -> vector<8x32xf32>
    %45 = arith.addf %24, %44 : vector<8x32xf32>
    %46 = vector.extract_strided_slice %22 {offsets = [0, 8], sizes = [8, 8], strides = [1, 1]} : vector<8x32xf32> to vector<8x8xf32>
    %47 = vector.extract_strided_slice %15 {offsets = [0, 8], sizes = [8, 8], strides = [1, 1]} : vector<8x32xf32> to vector<8x8xf32>
    %48 = vector.extract_strided_slice %20 {offsets = [0, 8], sizes = [8, 8], strides = [1, 1]} : vector<8x32xf32> to vector<8x8xf32>
    %cst_35 = arith.constant dense<0.000000e+00> : vector<8x8xf32>
    %49 = tpu.matmul %46, %47, %cst_35 {dimension_numbers = #tpu.dot_dimension_numbers<[1], [1], [0], [0], [0, 0, 1, 0], [], []>} : vector<8x8xf32>, vector<8x8xf32>, vector<8x8xf32> -> vector<8x8xf32>
    %cst_36 = arith.constant dense<0xFF800000> : vector<8xf32>
    %50 = vector.multi_reduction <maximumf>, %49, %cst_36 [1] : vector<8x8xf32> to vector<8xf32>
    %51 = vector.shape_cast %50 : vector<8xf32> to vector<8x1xf32>
    %52 = vector.broadcast %51 : vector<8x1xf32> to vector<8x8xf32>
    %53 = arith.subf %49, %52 : vector<8x8xf32>
    %54 = math.exp %53 : vector<8x8xf32>
    %cst_37 = arith.constant dense<0.000000e+00> : vector<8xf32>
    %55 = vector.multi_reduction <add>, %54, %cst_37 [1] : vector<8x8xf32> to vector<8xf32>
    %56 = vector.shape_cast %55 : vector<8xf32> to vector<8x1xf32>
    %57 = tpu.reciprocal %56 : vector<8x1xf32> -> vector<8x1xf32>
    %58 = vector.broadcast %57 : vector<8x1xf32> to vector<8x8xf32>
    %59 = arith.mulf %54, %58 : vector<8x8xf32>
    %c0_38 = arith.constant 0 : index
    %c1 = arith.constant 1 : index
    %c0_39 = arith.constant 0 : index
    %c0_40 = arith.constant 0 : index
    %60 = vector.load %arg13[%c0_38, %c1, %c0_39, %c0_40] : memref<1x4x8x8xf32, #tpu.memory_space<vmem>>, vector<1x1x8x8xf32>
    %61 = vector.shape_cast %60 : vector<1x1x8x8xf32> to vector<8x8xf32>
    %62 = vector.shape_cast %59 : vector<8x8xf32> to vector<1x1x8x8xf32>
    tpu.vector_store %arg13[%c0_38, %c1, %c0_39, %c0_40], %62 {strides = array<i32>} : memref<1x4x8x8xf32, #tpu.memory_space<vmem>>, vector<1x1x8x8xf32>,
    %cst_41 = arith.constant dense<0.000000e+00> : vector<8x8xf32>
    %63 = tpu.matmul %59, %48, %cst_41 {dimension_numbers = #tpu.dot_dimension_numbers<[1], [0], [0], [1], [0, 0, 1, 1], [], []>} : vector<8x8xf32>, vector<8x8xf32>, vector<8x8xf32> -> vector<8x8xf32>
    %64 = vector.extract_strided_slice %23 {offsets = [8, 0], sizes = [8, 32], strides = [1, 1]} : vector<32x32xf32> to vector<8x32xf32>
    %cst_42 = arith.constant dense<0.000000e+00> : vector<8x32xf32>
    %65 = tpu.matmul %63, %64, %cst_42 {dimension_numbers = #tpu.dot_dimension_numbers<[1], [0], [0], [1], [0, 0, 1, 1], [], []>} : vector<8x8xf32>, vector<8x32xf32>, vector<8x32xf32> -> vector<8x32xf32>
    %66 = arith.addf %45, %65 : vector<8x32xf32>
    %67 = vector.extract_strided_slice %22 {offsets = [0, 16], sizes = [8, 8], strides = [1, 1]} : vector<8x32xf32> to vector<8x8xf32>
    %68 = vector.extract_strided_slice %15 {offsets = [0, 16], sizes = [8, 8], strides = [1, 1]} : vector<8x32xf32> to vector<8x8xf32>
    %69 = vector.extract_strided_slice %20 {offsets = [0, 16], sizes = [8, 8], strides = [1, 1]} : vector<8x32xf32> to vector<8x8xf32>
    %cst_43 = arith.constant dense<0.000000e+00> : vector<8x8xf32>
    %70 = tpu.matmul %67, %68, %cst_43 {dimension_numbers = #tpu.dot_dimension_numbers<[1], [1], [0], [0], [0, 0, 1, 0], [], []>} : vector<8x8xf32>, vector<8x8xf32>, vector<8x8xf32> -> vector<8x8xf32>
    %cst_44 = arith.constant dense<0xFF800000> : vector<8xf32>
    %71 = vector.multi_reduction <maximumf>, %70, %cst_44 [1] : vector<8x8xf32> to vector<8xf32>
    %72 = vector.shape_cast %71 : vector<8xf32> to vector<8x1xf32>
    %73 = vector.broadcast %72 : vector<8x1xf32> to vector<8x8xf32>
    %74 = arith.subf %70, %73 : vector<8x8xf32>
    %75 = math.exp %74 : vector<8x8xf32>
    %cst_45 = arith.constant dense<0.000000e+00> : vector<8xf32>
    %76 = vector.multi_reduction <add>, %75, %cst_45 [1] : vector<8x8xf32> to vector<8xf32>
    %77 = vector.shape_cast %76 : vector<8xf32> to vector<8x1xf32>
    %78 = tpu.reciprocal %77 : vector<8x1xf32> -> vector<8x1xf32>
    %79 = vector.broadcast %78 : vector<8x1xf32> to vector<8x8xf32>
    %80 = arith.mulf %75, %79 : vector<8x8xf32>
    %c0_46 = arith.constant 0 : index
    %c2 = arith.constant 2 : index
    %c0_47 = arith.constant 0 : index
    %c0_48 = arith.constant 0 : index
    %81 = vector.load %arg13[%c0_46, %c2, %c0_47, %c0_48] : memref<1x4x8x8xf32, #tpu.memory_space<vmem>>, vector<1x1x8x8xf32>
    %82 = vector.shape_cast %81 : vector<1x1x8x8xf32> to vector<8x8xf32>
    %83 = vector.shape_cast %80 : vector<8x8xf32> to vector<1x1x8x8xf32>
    tpu.vector_store %arg13[%c0_46, %c2, %c0_47, %c0_48], %83 {strides = array<i32>} : memref<1x4x8x8xf32, #tpu.memory_space<vmem>>, vector<1x1x8x8xf32>,
    %cst_49 = arith.constant dense<0.000000e+00> : vector<8x8xf32>
    %84 = tpu.matmul %80, %69, %cst_49 {dimension_numbers = #tpu.dot_dimension_numbers<[1], [0], [0], [1], [0, 0, 1, 1], [], []>} : vector<8x8xf32>, vector<8x8xf32>, vector<8x8xf32> -> vector<8x8xf32>
    %85 = vector.extract_strided_slice %23 {offsets = [16, 0], sizes = [8, 32], strides = [1, 1]} : vector<32x32xf32> to vector<8x32xf32>
    %cst_50 = arith.constant dense<0.000000e+00> : vector<8x32xf32>
    %86 = tpu.matmul %84, %85, %cst_50 {dimension_numbers = #tpu.dot_dimension_numbers<[1], [0], [0], [1], [0, 0, 1, 1], [], []>} : vector<8x8xf32>, vector<8x32xf32>, vector<8x32xf32> -> vector<8x32xf32>
    %87 = arith.addf %66, %86 : vector<8x32xf32>
    %88 = vector.extract_strided_slice %22 {offsets = [0, 24], sizes = [8, 8], strides = [1, 1]} : vector<8x32xf32> to vector<8x8xf32>
    %89 = vector.extract_strided_slice %15 {offsets = [0, 24], sizes = [8, 8], strides = [1, 1]} : vector<8x32xf32> to vector<8x8xf32>
    %90 = vector.extract_strided_slice %20 {offsets = [0, 24], sizes = [8, 8], strides = [1, 1]} : vector<8x32xf32> to vector<8x8xf32>
    %cst_51 = arith.constant dense<0.000000e+00> : vector<8x8xf32>
    %91 = tpu.matmul %88, %89, %cst_51 {dimension_numbers = #tpu.dot_dimension_numbers<[1], [1], [0], [0], [0, 0, 1, 0], [], []>} : vector<8x8xf32>, vector<8x8xf32>, vector<8x8xf32> -> vector<8x8xf32>
    %cst_52 = arith.constant dense<0xFF800000> : vector<8xf32>
    %92 = vector.multi_reduction <maximumf>, %91, %cst_52 [1] : vector<8x8xf32> to vector<8xf32>
    %93 = vector.shape_cast %92 : vector<8xf32> to vector<8x1xf32>
    %94 = vector.broadcast %93 : vector<8x1xf32> to vector<8x8xf32>
    %95 = arith.subf %91, %94 : vector<8x8xf32>
    %96 = math.exp %95 : vector<8x8xf32>
    %cst_53 = arith.constant dense<0.000000e+00> : vector<8xf32>
    %97 = vector.multi_reduction <add>, %96, %cst_53 [1] : vector<8x8xf32> to vector<8xf32>
    %98 = vector.shape_cast %97 : vector<8xf32> to vector<8x1xf32>
    %99 = tpu.reciprocal %98 : vector<8x1xf32> -> vector<8x1xf32>
    %100 = vector.broadcast %99 : vector<8x1xf32> to vector<8x8xf32>
    %101 = arith.mulf %96, %100 : vector<8x8xf32>
    %c0_54 = arith.constant 0 : index
    %c3 = arith.constant 3 : index
    %c0_55 = arith.constant 0 : index
    %c0_56 = arith.constant 0 : index
    %102 = vector.load %arg13[%c0_54, %c3, %c0_55, %c0_56] : memref<1x4x8x8xf32, #tpu.memory_space<vmem>>, vector<1x1x8x8xf32>
    %103 = vector.shape_cast %102 : vector<1x1x8x8xf32> to vector<8x8xf32>
    %104 = vector.shape_cast %101 : vector<8x8xf32> to vector<1x1x8x8xf32>
    tpu.vector_store %arg13[%c0_54, %c3, %c0_55, %c0_56], %104 {strides = array<i32>} : memref<1x4x8x8xf32, #tpu.memory_space<vmem>>, vector<1x1x8x8xf32>,
    %cst_57 = arith.constant dense<0.000000e+00> : vector<8x8xf32>
    %105 = tpu.matmul %101, %90, %cst_57 {dimension_numbers = #tpu.dot_dimension_numbers<[1], [0], [0], [1], [0, 0, 1, 1], [], []>} : vector<8x8xf32>, vector<8x8xf32>, vector<8x8xf32> -> vector<8x8xf32>
    %106 = vector.extract_strided_slice %23 {offsets = [24, 0], sizes = [8, 32], strides = [1, 1]} : vector<32x32xf32> to vector<8x32xf32>
    %cst_58 = arith.constant dense<0.000000e+00> : vector<8x32xf32>
    %107 = tpu.matmul %105, %106, %cst_58 {dimension_numbers = #tpu.dot_dimension_numbers<[1], [0], [0], [1], [0, 0, 1, 1], [], []>} : vector<8x8xf32>, vector<8x32xf32>, vector<8x32xf32> -> vector<8x32xf32>
    %108 = arith.addf %87, %107 : vector<8x32xf32>
    %c0_59 = arith.constant 0 : index
    %c0_60 = arith.constant 0 : index
    %109 = vector.load %arg11[%c0_59, %c0_60] : memref<1x32xf32, #tpu.memory_space<vmem>>, vector<1x32xf32>
    %110 = vector.broadcast %109 : vector<1x32xf32> to vector<8x32xf32>
    %111 = arith.addf %108, %110 : vector<8x32xf32>
    %c0_61 = arith.constant 0 : index
    %c0_62 = arith.constant 0 : index
    %c0_63 = arith.constant 0 : index
    %112 = vector.load %arg12[%c0_61, %c0_62, %c0_63] : memref<1x8x32xf32, #tpu.memory_space<vmem>>, vector<1x8x32xf32>
    %113 = vector.shape_cast %112 : vector<1x8x32xf32> to vector<8x32xf32>
    %114 = vector.shape_cast %111 : vector<8x32xf32> to vector<1x8x32xf32>
    tpu.vector_store %arg12[%c0_61, %c0_62, %c0_63], %114 {strides = array<i32>} : memref<1x8x32xf32, #tpu.memory_space<vmem>>, vector<1x8x32xf32>,
    return
  }
  func.func @transform_0(%arg0: i32) -> (i32, i32, i32) {
    %c0_i32 = arith.constant 0 : i32
    %c0_i32_0 = arith.constant 0 : i32
    %c0_i32_1 = arith.constant 0 : i32
    return %arg0, %c0_i32, %c0_i32_0 : i32, i32, i32
  }
  func.func @transform_1(%arg0: i32) -> (i32, i32, i32) {
    %c0_i32 = arith.constant 0 : i32
    %c0_i32_0 = arith.constant 0 : i32
    %c0_i32_1 = arith.constant 0 : i32
    return %arg0, %c0_i32, %c0_i32_0 : i32, i32, i32
  }
  func.func @transform_2(%arg0: i32) -> (i32, i32, i32) {
    %c0_i32 = arith.constant 0 : i32
    %c0_i32_0 = arith.constant 0 : i32
    %c0_i32_1 = arith.constant 0 : i32
    return %arg0, %c0_i32, %c0_i32_0 : i32, i32, i32
  }
  func.func @transform_3(%arg0: i32) -> (i32, i32) {
    %c0_i32 = arith.constant 0 : i32
    %c0_i32_0 = arith.constant 0 : i32
    %c0_i32_1 = arith.constant 0 : i32
    return %c0_i32, %c0_i32_0 : i32, i32
  }
  func.func @transform_4(%arg0: i32) -> (i32, i32) {
    %c0_i32 = arith.constant 0 : i32
    %c0_i32_0 = arith.constant 0 : i32
    %c0_i32_1 = arith.constant 0 : i32
    return %c0_i32, %c0_i32_0 : i32, i32
  }
  func.func @transform_5(%arg0: i32) -> (i32, i32) {
    %c0_i32 = arith.constant 0 : i32
    %c0_i32_0 = arith.constant 0 : i32
    %c0_i32_1 = arith.constant 0 : i32
    return %c0_i32, %c0_i32_0 : i32, i32
  }
  func.func @transform_6(%arg0: i32) -> (i32, i32) {
    %c0_i32 = arith.constant 0 : i32
    %c0_i32_0 = arith.constant 0 : i32
    %c0_i32_1 = arith.constant 0 : i32
    return %c0_i32, %c0_i32_0 : i32, i32
  }
  func.func @transform_7(%arg0: i32) -> (i32, i32) {
    %c0_i32 = arith.constant 0 : i32
    %c0_i32_0 = arith.constant 0 : i32
    %c0_i32_1 = arith.constant 0 : i32
    return %c0_i32, %c0_i32_0 : i32, i32
  }
  func.func @transform_8(%arg0: i32) -> (i32, i32) {
    %c0_i32 = arith.constant 0 : i32
    %c0_i32_0 = arith.constant 0 : i32
    %c0_i32_1 = arith.constant 0 : i32
    return %c0_i32, %c0_i32_0 : i32, i32
  }
  func.func @transform_9(%arg0: i32) -> (i32, i32) {
    %c0_i32 = arith.constant 0 : i32
    %c0_i32_0 = arith.constant 0 : i32
    %c0_i32_1 = arith.constant 0 : i32
    return %c0_i32, %c0_i32_0 : i32, i32
  }
  func.func @transform_10(%arg0: i32) -> (i32, i32) {
    %c0_i32 = arith.constant 0 : i32
    %c0_i32_0 = arith.constant 0 : i32
    %c0_i32_1 = arith.constant 0 : i32
    return %c0_i32, %c0_i32_0 : i32, i32
  }
  func.func @transform_11(%arg0: i32) -> (i32, i32, i32) {
    %c0_i32 = arith.constant 0 : i32
    %c0_i32_0 = arith.constant 0 : i32
    %c0_i32_1 = arith.constant 0 : i32
    return %arg0, %c0_i32, %c0_i32_0 : i32, i32, i32
  }
  func.func @transform_12(%arg0: i32) -> (i32, i32, i32, i32) {
    %c0_i32 = arith.constant 0 : i32
    %c0_i32_0 = arith.constant 0 : i32
    %c0_i32_1 = arith.constant 0 : i32
    %c0_i32_2 = arith.constant 0 : i32
    return %arg0, %c0_i32, %c0_i32_0, %c0_i32_1 : i32, i32, i32, i32
  }
}

</mosaic_0001>

<llo_original>
// kernel: tpu_custom_call.1
$region0: #{tpu_custom_call.1}
  #allocation0 [shape = 'u32[]', space=smem, size = 0x4, offset = 0x4, fixed_abs, tag = 'smem constant byte address 0x4 - core index']
  #allocation1 [shape = 'u32[72,128]{1,0:T(1,128)}', space=vmem, size = 0x9000, scoped, tag = 'internal scratch']
  %s0 = inlined_call_operand.hbm [shape: f32[2,8,32], index: 0, kind: input, shape index: {}]
  %s1 = inlined_call_operand.hbm [shape: f32[2,8,32], index: 1, kind: input, shape index: {}]
  %s2 = inlined_call_operand.hbm [shape: f32[2,8,32], index: 2, kind: input, shape index: {}]
  %s3 = inlined_call_operand.hbm [shape: f32[32,32], index: 3, kind: input, shape index: {}]
  %s4 = inlined_call_operand.hbm [shape: f32[32,32], index: 4, kind: input, shape index: {}]
  %s5 = inlined_call_operand.hbm [shape: f32[32,32], index: 5, kind: input, shape index: {}]
  %s6 = inlined_call_operand.hbm [shape: f32[32,32], index: 6, kind: input, shape index: {}]
  %s7 = inlined_call_operand.vmem [shape: f32[1,32], index: 7, kind: input, shape index: {}]
  %s8 = inlined_call_operand.vmem [shape: f32[1,32], index: 8, kind: input, shape index: {}]
  %s9 = inlined_call_operand.vmem [shape: f32[1,32], index: 9, kind: input, shape index: {}]
  %s10 = inlined_call_operand.vmem [shape: f32[1,32], index: 10, kind: input, shape index: {}]
  %s11 = inlined_call_operand.hbm [shape: f32[2,8,32], index: 11, kind: output, shape index: {0}]
  %s12 = inlined_call_operand.hbm [shape: f32[2,4,8,8], index: 12, kind: output, shape index: {1}]
  %13 = xla_tuple %s11, %s12
  %s14 = sld [smem:[#allocation0]]
  $region113: #{tpu_custom_call.1} parent=0
    _
  %s16 = ssub.s32 1, %s14
  %s17 = scalar_select 0, %s16, %s14
  $region1: #{tpu_custom_call.1} parent=0
    #allocation2 [shape = 'u8[8192]{0}', space=vmem, size = 0x2000, scoped, tag = 'input window, operand 0']
    #allocation3 [shape = 's32[2]{0}', space=sflag, size = 0x8, scoped, tag = 'scoped memory for tpu_custom_call.1']
    #allocation4 [shape = 's32[2]{0}', space=sflag, size = 0x8, scoped, tag = 'scoped memory for tpu_custom_call.1']
    #allocation5 [shape = 'u8[8192]{0}', space=vmem, size = 0x2000, scoped, tag = 'input window, operand 1']
    #allocation6 [shape = 's32[2]{0}', space=sflag, size = 0x8, scoped, tag = 'scoped memory for tpu_custom_call.1']
    #allocation7 [shape = 'u8[8192]{0}', space=vmem, size = 0x2000, scoped, tag = 'input window, operand 2']
    #allocation8 [shape = 'u8[16384]{0}', space=vmem, size = 0x4000, scoped, tag = 'input window, operand 3, single buffered']
    #allocation9 [shape = 's32[1]{0}', space=sflag, size = 0x4, scoped, tag = 'scoped memory for tpu_custom_call.1']
    #allocation10 [shape = 'u8[16384]{0}', space=vmem, size = 0x4000, scoped, tag = 'input window, operand 4, single buffered']
    #allocation11 [shape = 'u8[16384]{0}', space=vmem, size = 0x4000, scoped, tag = 'input window, operand 5, single buffered']
    #allocation12 [shape = 's32[1]{0}', space=sflag, size = 0x4, scoped, tag = 'scoped memory for tpu_custom_call.1']
    #allocation13 [shape = 'u8[16384]{0}', space=vmem, size = 0x4000, scoped, tag = 'input window, operand 6, single buffered']
    #allocation14 [shape = 'u8[8192]{0}', space=vmem, size = 0x2000, scoped, tag = 'output window, operand 0']
    #allocation15 [shape = 'u8[32768]{0}', space=vmem, size = 0x8000, scoped, tag = 'output window, operand 1']
    #allocation16 [shape = 's32[2]{0}', space=sflag, size = 0x8, scoped, tag = 'scoped memory for tpu_custom_call.1']
    %18 = vsyncpa [#allocation3], 0
    %s19 = scalar_lea.sflag [#allocation3], 1
    %20 = vsyncpa %s19, 0
    %21 = vsyncpa [#allocation6], 0
    %s22 = scalar_lea.sflag [#allocation6], 1
    %23 = vsyncpa %s22, 0
    %24 = vsyncpa [#allocation9], 0
    %25 = vsyncpa [#allocation12], 0
    %26 = vsyncpa [#allocation4], 0
    %s27 = scalar_lea.sflag [#allocation4], 1
    %28 = vsyncpa %s27, 0
    %29 = vsyncpa [#allocation16], 0
    %s30 = scalar_lea.sflag [#allocation16], 1
    %31 = vsyncpa %s30, 0
    loop: start=0, step=1, limit=4
    $region2: #{tpu_custom_call.1} parent=1 // loop_pre_header
      _
    $region3: #{tpu_custom_call.1} parent=1 // loop_header
      %s33 = sphi 0, %s37
      %p34 = scmp.ge.s32.totalorder %s33, 4
      %s43 = sphi 0, %s45
      %s46 = sphi 0, %s43
      %s47 = sphi 0, %s46
      %s63 = sphi 0, %s47
      %s69 = sphi 0, %s71
      %s72 = sphi 0, %s69
      %s73 = sphi 0, %s72
      %s89 = sphi 0, %s73
      %s95 = sphi 0, %s97
      %s98 = sphi 0, %s95
      %s99 = sphi 0, %s98
      %s115 = sphi 0, %s99
      %s119 = sphi 0, %s119
      %s121 = sphi 0, %s119
      %s122 = sphi 0, %s121
      %s136 = sphi 0, %s122
      %s140 = sphi 0, %s140
      %s142 = sphi 0, %s140
      %s143 = sphi 0, %s142
      %s157 = sphi 0, %s143
      %s161 = sphi 0, %s161
      %s163 = sphi 0, %s161
      %s164 = sphi 0, %s163
      %s178 = sphi 0, %s164
      %s182 = sphi 0, %s182
      %s184 = sphi 0, %s182
      %s185 = sphi 0, %s184
      %s199 = sphi 0, %s185
      %s203 = sphi 0, %s203
      %s205 = sphi 0, %s203
      %s206 = sphi 0, %s205
      %s220 = sphi 0, %s206
      %s224 = sphi 0, %s224
      %s226 = sphi 0, %s224
      %s227 = sphi 0, %s226
      %s241 = sphi 0, %s227
      %s245 = sphi 0, %s245
      %s247 = sphi 0, %s245
      %s248 = sphi 0, %s247
      %s262 = sphi 0, %s248
      %s266 = sphi 0, %s266
      %s268 = sphi 0, %s266
      %s269 = sphi 0, %s268
      %s283 = sphi 0, %s269
      %s289 = sphi 0, %s291
      %s292 = sphi 0, %s289
      %s293 = sphi 0, %s292
      %s309 = sphi 0, %s293
      %s315 = sphi 0, %s317
      %s318 = sphi 0, %s315
      %s319 = sphi 0, %s318
      %s335 = sphi 0, %s319
    $region4: #{tpu_custom_call.1} parent=1 // loop_header_branch
      %36 = sbr.rel (%p34) target = $region8
    $region5: #{tpu_custom_call.1} parent=1 // loop_body
      %s38 = ssub.s32 %s33, 1
      %s39 = ssub.s32 %s33, 2
      %s40 = sadd.s32 %s33, 1
      %s41 = ssub.s32 %s33, %s40
      %p42 = scmp.eq.s32.totalorder %s41, 0
      %s44 = sadd.s32 %s43, 1
      %s45 = scalar_select %p42, %s43, %s44
      %p48 = pneg %p42
      %p49 = scmp.eq.s32.totalorder %s33, 1
      %p50 = por %p48, %p49
      %p51 = scmp.ne.s32.totalorder %s43, %s46
      %p52 = scmp.eq.s32.totalorder %s33, 0
      %p53 = por %p51, %p52
      %p54 = scmp.ne.s32.totalorder %s43, %s46
      %p55 = scmp.eq.s32.totalorder %s38, 1
      %p56 = por %p54, %p55
      %p57 = scmp.ne.s32.totalorder %s46, %s47
      %p58 = scmp.eq.s32.totalorder %s38, 0
      %p59 = por %p57, %p58
      %p60 = scmp.ne.s32.totalorder %s46, %s47
      %p61 = scmp.eq.s32.totalorder %s39, 1
      %p62 = por %p60, %p61
      %p64 = scmp.ne.s32.totalorder %s47, %s63
      %p65 = scmp.eq.s32.totalorder %s39, 0
      %p66 = por %p64, %p65
      %s67 = ssub.s32 %s33, %s40
      %p68 = scmp.eq.s32.totalorder %s67, 0
      %s70 = sadd.s32 %s69, 1
      %s71 = scalar_select %p68, %s69, %s70
      %p74 = pneg %p68
      %p75 = scmp.eq.s32.totalorder %s33, 1
      %p76 = por %p74, %p75
      %p77 = scmp.ne.s32.totalorder %s69, %s72
      %p78 = scmp.eq.s32.totalorder %s33, 0
      %p79 = por %p77, %p78
      %p80 = scmp.ne.s32.totalorder %s69, %s72
      %p81 = scmp.eq.s32.totalorder %s38, 1
      %p82 = por %p80, %p81
      %p83 = scmp.ne.s32.totalorder %s72, %s73
      %p84 = scmp.eq.s32.totalorder %s38, 0
      %p85 = por %p83, %p84
      %p86 = scmp.ne.s32.totalorder %s72, %s73
      %p87 = scmp.eq.s32.totalorder %s39, 1
      %p88 = por %p86, %p87
      %p90 = scmp.ne.s32.totalorder %s73, %s89
      %p91 = scmp.eq.s32.totalorder %s39, 0
      %p92 = por %p90, %p91
      %s93 = ssub.s32 %s33, %s40
      %p94 = scmp.eq.s32.totalorder %s93, 0
      %s96 = sadd.s32 %s95, 1
      %s97 = scalar_select %p94, %s95, %s96
      %p100 = pneg %p94
      %p101 = scmp.eq.s32.totalorder %s33, 1
      %p102 = por %p100, %p101
      %p103 = scmp.ne.s32.totalorder %s95, %s98
      %p104 = scmp.eq.s32.totalorder %s33, 0
      %p105 = por %p103, %p104
      %p106 = scmp.ne.s32.totalorder %s95, %s98
      %p107 = scmp.eq.s32.totalorder %s38, 1
      %p108 = por %p106, %p107
      %p109 = scmp.ne.s32.totalorder %s98, %s99
      %p110 = scmp.eq.s32.totalorder %s38, 0
      %p111 = por %p109, %p110
      %p112 = scmp.ne.s32.totalorder %s98, %s99
      %p113 = scmp.eq.s32.totalorder %s39, 1
      %p114 = por %p112, %p113
      %p116 = scmp.ne.s32.totalorder %s99, %s115
      %p117 = scmp.eq.s32.totalorder %s39, 0
      %p118 = por %p116, %p117
      %s120 = sadd.s32 %s119, 1
      %p123 = scmp.eq.s32.totalorder %s33, 1
      %p124 = scmp.ne.s32.totalorder %s119, %s121
      %p125 = scmp.eq.s32.totalorder %s33, 0
      %p126 = por %p124, %p125
      %p127 = scmp.ne.s32.totalorder %s119, %s121
      %p128 = scmp.eq.s32.totalorder %s38, 1
      %p129 = por %p127, %p128
      %p130 = scmp.ne.s32.totalorder %s121, %s122
      %p131 = scmp.eq.s32.totalorder %s38, 0
      %p132 = por %p130, %p131
      %p133 = scmp.ne.s32.totalorder %s121, %s122
      %p134 = scmp.eq.s32.totalorder %s39, 1
      %p135 = por %p133, %p134
      %p137 = scmp.ne.s32.totalorder %s122, %s136
      %p138 = scmp.eq.s32.totalorder %s39, 0
      %p139 = por %p137, %p138
      %s141 = sadd.s32 %s140, 1
      %p144 = scmp.eq.s32.totalorder %s33, 1
      %p145 = scmp.ne.s32.totalorder %s140, %s142
      %p146 = scmp.eq.s32.totalorder %s33, 0
      %p147 = por %p145, %p146
      %p148 = scmp.ne.s32.totalorder %s140, %s142
      %p149 = scmp.eq.s32.totalorder %s38, 1
      %p150 = por %p148, %p149
      %p151 = scmp.ne.s32.totalorder %s142, %s143
      %p152 = scmp.eq.s32.totalorder %s38, 0
      %p153 = por %p151, %p152
      %p154 = scmp.ne.s32.totalorder %s142, %s143
      %p155 = scmp.eq.s32.totalorder %s39, 1
      %p156 = por %p154, %p155
      %p158 = scmp.ne.s32.totalorder %s143, %s157
      %p159 = scmp.eq.s32.totalorder %s39, 0
      %p160 = por %p158, %p159
      %s162 = sadd.s32 %s161, 1
      %p165 = scmp.eq.s32.totalorder %s33, 1
      %p166 = scmp.ne.s32.totalorder %s161, %s163
      %p167 = scmp.eq.s32.totalorder %s33, 0
      %p168 = por %p166, %p167
      %p169 = scmp.ne.s32.totalorder %s161, %s163
      %p170 = scmp.eq.s32.totalorder %s38, 1
      %p171 = por %p169, %p170
      %p172 = scmp.ne.s32.totalorder %s163, %s164
      %p173 = scmp.eq.s32.totalorder %s38, 0
      %p174 = por %p172, %p173
      %p175 = scmp.ne.s32.totalorder %s163, %s164
      %p176 = scmp.eq.s32.totalorder %s39, 1
      %p177 = por %p175, %p176
      %p179 = scmp.ne.s32.totalorder %s164, %s178
      %p180 = scmp.eq.s32.totalorder %s39, 0
      %p181 = por %p179, %p180
      %s183 = sadd.s32 %s182, 1
      %p186 = scmp.eq.s32.totalorder %s33, 1
      %p187 = scmp.ne.s32.totalorder %s182, %s184
      %p188 = scmp.eq.s32.totalorder %s33, 0
      %p189 = por %p187, %p188
      %p190 = scmp.ne.s32.totalorder %s182, %s184
      %p191 = scmp.eq.s32.totalorder %s38, 1
      %p192 = por %p190, %p191
      %p193 = scmp.ne.s32.totalorder %s184, %s185
      %p194 = scmp.eq.s32.totalorder %s38, 0
      %p195 = por %p193, %p194
      %p196 = scmp.ne.s32.totalorder %s184, %s185
      %p197 = scmp.eq.s32.totalorder %s39, 1
      %p198 = por %p196, %p197
      %p200 = scmp.ne.s32.totalorder %s185, %s199
      %p201 = scmp.eq.s32.totalorder %s39, 0
      %p202 = por %p200, %p201
      %s204 = sadd.s32 %s203, 1
      %p207 = scmp.eq.s32.totalorder %s33, 1
      %p208 = scmp.ne.s32.totalorder %s203, %s205
      %p209 = scmp.eq.s32.totalorder %s33, 0
      %p210 = por %p208, %p209
      %p211 = scmp.ne.s32.totalorder %s203, %s205
      %p212 = scmp.eq.s32.totalorder %s38, 1
      %p213 = por %p211, %p212
      %p214 = scmp.ne.s32.totalorder %s205, %s206
      %p215 = scmp.eq.s32.totalorder %s38, 0
      %p216 = por %p214, %p215
      %p217 = scmp.ne.s32.totalorder %s205, %s206
      %p218 = scmp.eq.s32.totalorder %s39, 1
      %p219 = por %p217, %p218
      %p221 = scmp.ne.s32.totalorder %s206, %s220
      %p222 = scmp.eq.s32.totalorder %s39, 0
      %p223 = por %p221, %p222
      %s225 = sadd.s32 %s224, 1
      %p228 = scmp.eq.s32.totalorder %s33, 1
      %p229 = scmp.ne.s32.totalorder %s224, %s226
      %p230 = scmp.eq.s32.totalorder %s33, 0
      %p231 = por %p229, %p230
      %p232 = scmp.ne.s32.totalorder %s224, %s226
      %p233 = scmp.eq.s32.totalorder %s38, 1
      %p234 = por %p232, %p233
      %p235 = scmp.ne.s32.totalorder %s226, %s227
      %p236 = scmp.eq.s32.totalorder %s38, 0
      %p237 = por %p235, %p236
      %p238 = scmp.ne.s32.totalorder %s226, %s227
      %p239 = scmp.eq.s32.totalorder %s39, 1
      %p240 = por %p238, %p239
      %p242 = scmp.ne.s32.totalorder %s227, %s241
      %p243 = scmp.eq.s32.totalorder %s39, 0
      %p244 = por %p242, %p243
      %s246 = sadd.s32 %s245, 1
      %p249 = scmp.eq.s32.totalorder %s33, 1
      %p250 = scmp.ne.s32.totalorder %s245, %s247
      %p251 = scmp.eq.s32.totalorder %s33, 0
      %p252 = por %p250, %p251
      %p253 = scmp.ne.s32.totalorder %s245, %s247
      %p254 = scmp.eq.s32.totalorder %s38, 1
      %p255 = por %p253, %p254
      %p256 = scmp.ne.s32.totalorder %s247, %s248
      %p257 = scmp.eq.s32.totalorder %s38, 0
      %p258 = por %p256, %p257
      %p259 = scmp.ne.s32.totalorder %s247, %s248
      %p260 = scmp.eq.s32.totalorder %s39, 1
      %p261 = por %p259, %p260
      %p263 = scmp.ne.s32.totalorder %s248, %s262
      %p264 = scmp.eq.s32.totalorder %s39, 0
      %p265 = por %p263, %p264
      %s267 = sadd.s32 %s266, 1
      %p270 = scmp.eq.s32.totalorder %s33, 1
      %p271 = scmp.ne.s32.totalorder %s266, %s268
      %p272 = scmp.eq.s32.totalorder %s33, 0
      %p273 = por %p271, %p272
      %p274 = scmp.ne.s32.totalorder %s266, %s268
      %p275 = scmp.eq.s32.totalorder %s38, 1
      %p276 = por %p274, %p275
      %p277 = scmp.ne.s32.totalorder %s268, %s269
      %p278 = scmp.eq.s32.totalorder %s38, 0
      %p279 = por %p277, %p278
      %p280 = scmp.ne.s32.totalorder %s268, %s269
      %p281 = scmp.eq.s32.totalorder %s39, 1
      %p282 = por %p280, %p281
      %p284 = scmp.ne.s32.totalorder %s269, %s283
      %p285 = scmp.eq.s32.totalorder %s39, 0
      %p286 = por %p284, %p285
      %s287 = ssub.s32 %s33, %s40
      %p288 = scmp.eq.s32.totalorder %s287, 0
      %s290 = sadd.s32 %s289, 1
      %s291 = scalar_select %p288, %s289, %s290
      %p294 = pneg %p288
      %p295 = scmp.eq.s32.totalorder %s33, 1
      %p296 = por %p294, %p295
      %p297 = scmp.ne.s32.totalorder %s289, %s292
      %p298 = scmp.eq.s32.totalorder %s33, 0
      %p299 = por %p297, %p298
      %p300 = scmp.ne.s32.totalorder %s289, %s292
      %p301 = scmp.eq.s32.totalorder %s38, 1
      %p302 = por %p300, %p301
      %p303 = scmp.ne.s32.totalorder %s292, %s293
      %p304 = scmp.eq.s32.totalorder %s38, 0
      %p305 = por %p303, %p304
      %p306 = scmp.ne.s32.totalorder %s292, %s293
      %p307 = scmp.eq.s32.totalorder %s39, 1
      %p308 = por %p306, %p307
      %p310 = scmp.ne.s32.totalorder %s293, %s309
      %p311 = scmp.eq.s32.totalorder %s39, 0
      %p312 = por %p310, %p311
      %s313 = ssub.s32 %s33, %s40
      %p314 = scmp.eq.s32.totalorder %s313, 0
      %s316 = sadd.s32 %s315, 1
      %s317 = scalar_select %p314, %s315, %s316
      %p320 = pneg %p314
      %p321 = scmp.eq.s32.totalorder %s33, 1
      %p322 = por %p320, %p321
      %p323 = scmp.ne.s32.totalorder %s315, %s318
      %p324 = scmp.eq.s32.totalorder %s33, 0
      %p325 = por %p323, %p324
      %p326 = scmp.ne.s32.totalorder %s315, %s318
      %p327 = scmp.eq.s32.totalorder %s38, 1
      %p328 = por %p326, %p327
      %p329 = scmp.ne.s32.totalorder %s318, %s319
      %p330 = scmp.eq.s32.totalorder %s38, 0
      %p331 = por %p329, %p330
      %p332 = scmp.ne.s32.totalorder %s318, %s319
      %p333 = scmp.eq.s32.totalorder %s39, 1
      %p334 = por %p332, %p333
      %p336 = scmp.ne.s32.totalorder %s319, %s335
      %p337 = scmp.eq.s32.totalorder %s39, 0
      %p338 = por %p336, %p337
      %p339 = scmp.le.s32.totalorder 1, %s33
      %p340 = scmp.lt.s32.totalorder %s33, 3
      %p341 = pnand %p339, %p340
      %p342 = pneg %p341
      // Predicated region
      $region9: #{tpu_custom_call.1} parent=5 // pred_check
        _
      $region10: #{tpu_custom_call.1} parent=5 // pred_check_branch
        %344 = sbr.rel (%p341) target = $region12
      $region11: #{tpu_custom_call.1} parent=5 // pred_region
        %s345 = ssub.s32 %s33, 1
        // Predicated region
        $region13: #{tpu_custom_call.1} parent=11 // pred_check
          %p346 = pneg %p132
        $region14: #{tpu_custom_call.1} parent=11 // pred_check_branch
          %348 = sbr.rel (%p346) target = $region16
        $region15: #{tpu_custom_call.1} parent=11 // pred_region
          %350 = vsyncadd [#allocation9], 0
          %s351 = sshll.u32 %s3, 4
          %s352 = int_to_ptr.hbm [resolvable:$true] %s351
          %s353 = sshll.u32 [#allocation8], 4
          %s354 = int_to_ptr.vmem [resolvable:$true] %s353
          %359 = dma.hbm_to_vmem [thread:$0]  %s352, 512, %s354, [#allocation9], 128, 128, 8
        $region16: #{tpu_custom_call.1} parent=11 // pred_fallthru
          _
        // Predicated region
        $region17: #{tpu_custom_call.1} parent=11 // pred_check
          %p360 = pneg %p153
        $region18: #{tpu_custom_call.1} parent=11 // pred_check_branch
          %362 = sbr.rel (%p360) target = $region20
        $region19: #{tpu_custom_call.1} parent=11 // pred_region
          %364 = vsyncadd [#allocation9], 0
          %s365 = sshll.u32 %s4, 4
          %s366 = int_to_ptr.hbm [resolvable:$true] %s365
          %s367 = sshll.u32 [#allocation10], 4
          %s368 = int_to_ptr.vmem [resolvable:$true] %s367
          %373 = dma.hbm_to_vmem [thread:$0]  %s366, 512, %s368, [#allocation9], 128, 128, 8
        $region20: #{tpu_custom_call.1} parent=11 // pred_fallthru
          _
        // Predicated region
        $region21: #{tpu_custom_call.1} parent=11 // pred_check
          %p374 = pneg %p174
        $region22: #{tpu_custom_call.1} parent=11 // pred_check_branch
          %376 = sbr.rel (%p374) target = $region24
        $region23: #{tpu_custom_call.1} parent=11 // pred_region
          %378 = vsyncadd [#allocation12], 0
          %s379 = sshll.u32 %s5, 4
          %s380 = int_to_ptr.hbm [resolvable:$true] %s379
          %s381 = sshll.u32 [#allocation11], 4
          %s382 = int_to_ptr.vmem [resolvable:$true] %s381
          %387 = dma.hbm_to_vmem [thread:$0]  %s380, 512, %s382, [#allocation12], 128, 128, 8
        $region24: #{tpu_custom_call.1} parent=11 // pred_fallthru
          _
        // Predicated region
        $region25: #{tpu_custom_call.1} parent=11 // pred_check
          %p388 = pneg %p195
        $region26: #{tpu_custom_call.1} parent=11 // pred_check_branch
          %390 = sbr.rel (%p388) target = $region28
        $region27: #{tpu_custom_call.1} parent=11 // pred_region
          %392 = vsyncadd [#allocation12], 0
          %s393 = sshll.u32 %s6, 4
          %s394 = int_to_ptr.hbm [resolvable:$true] %s393
          %s395 = sshll.u32 [#allocation13], 4
          %s396 = int_to_ptr.vmem [resolvable:$true] %s395
          %401 = dma.hbm_to_vmem [thread:$0]  %s394, 512, %s396, [#allocation12], 128, 128, 8
        $region28: #{tpu_custom_call.1} parent=11 // pred_fallthru
          _
        // Predicated region
        $region29: #{tpu_custom_call.1} parent=11 // pred_check
          %p402 = pneg %p216
        $region30: #{tpu_custom_call.1} parent=11 // pred_check_branch
          %404 = sbr.rel (%p402) target = $region32
        $region31: #{tpu_custom_call.1} parent=11 // pred_region
          _
        $region32: #{tpu_custom_call.1} parent=11 // pred_fallthru
          _
        // Predicated region
        $region33: #{tpu_custom_call.1} parent=11 // pred_check
          %p405 = pneg %p237
        $region34: #{tpu_custom_call.1} parent=11 // pred_check_branch
          %407 = sbr.rel (%p405) target = $region36
        $region35: #{tpu_custom_call.1} parent=11 // pred_region
          _
        $region36: #{tpu_custom_call.1} parent=11 // pred_fallthru
          _
        // Predicated region
        $region37: #{tpu_custom_call.1} parent=11 // pred_check
          %p408 = pneg %p258
        $region38: #{tpu_custom_call.1} parent=11 // pred_check_branch
          %410 = sbr.rel (%p408) target = $region40
        $region39: #{tpu_custom_call.1} parent=11 // pred_region
          _
        $region40: #{tpu_custom_call.1} parent=11 // pred_fallthru
          _
        // Predicated region
        $region41: #{tpu_custom_call.1} parent=11 // pred_check
          %p411 = pneg %p279
        $region42: #{tpu_custom_call.1} parent=11 // pred_check_branch
          %413 = sbr.rel (%p411) target = $region44
        $region43: #{tpu_custom_call.1} parent=11 // pred_region
          _
        $region44: #{tpu_custom_call.1} parent=11 // pred_fallthru
          _
      $region12: #{tpu_custom_call.1} parent=5 // pred_fallthru
        _
      %p414 = scmp.lt.s32.totalorder %s33, 2
      // Predicated region
      $region45: #{tpu_custom_call.1} parent=5 // pred_check
        %p415 = pneg %p414
      $region46: #{tpu_custom_call.1} parent=5 // pred_check_branch
        %417 = sbr.rel (%p415) target = $region48
      $region47: #{tpu_custom_call.1} parent=5 // pred_region
        // Predicated region
        $region49: #{tpu_custom_call.1} parent=47 // pred_check
          %p418 = pneg %p53
        $region50: #{tpu_custom_call.1} parent=47 // pred_check_branch
          %420 = sbr.rel (%p418) target = $region52
        $region51: #{tpu_custom_call.1} parent=47 // pred_region
          %s421 = sand.u32 %s43, 1
          %s422 = scalar_lea.sflag [#allocation3], %s421
          %s423 = sand.u32 %s43, 1
          %s424 = smul.addr %s423, 8
          %s425 = scalar_lea.vmem [#allocation2], %s424
          %427 = vsyncadd %s422, 0
          %s428 = smul.addr %s33, 8
          %s429 = scalar_lea.hbm %s0, %s428
          %s431 = sshll.u32 %s429, 4
          %s432 = int_to_ptr.hbm [resolvable:$true] %s431
          %s433 = sshll.u32 %s425, 4
          %s434 = int_to_ptr.vmem [resolvable:$true] %s433
          %436 = dma.hbm_to_vmem [thread:$0]  %s432, 128, %s434, %s422
        $region52: #{tpu_custom_call.1} parent=47 // pred_fallthru
          _
        // Predicated region
        $region53: #{tpu_custom_call.1} parent=47 // pred_check
          %p437 = pneg %p79
        $region54: #{tpu_custom_call.1} parent=47 // pred_check_branch
          %439 = sbr.rel (%p437) target = $region56
        $region55: #{tpu_custom_call.1} parent=47 // pred_region
          %s440 = sand.u32 %s33, 1
          %s441 = scalar_lea.sflag [#allocation6], %s440
          %s442 = sand.u32 %s69, 1
          %s443 = smul.addr %s442, 8
          %s444 = scalar_lea.vmem [#allocation5], %s443
          %446 = vsyncadd %s441, 0
          %s447 = smul.addr %s33, 8
          %s448 = scalar_lea.hbm %s1, %s447
          %s450 = sshll.u32 %s448, 4
          %s451 = int_to_ptr.hbm [resolvable:$true] %s450
          %s452 = sshll.u32 %s444, 4
          %s453 = int_to_ptr.vmem [resolvable:$true] %s452
          %455 = dma.hbm_to_vmem [thread:$0]  %s451, 128, %s453, %s441
        $region56: #{tpu_custom_call.1} parent=47 // pred_fallthru
          _
        // Predicated region
        $region57: #{tpu_custom_call.1} parent=47 // pred_check
          %p456 = pneg %p105
        $region58: #{tpu_custom_call.1} parent=47 // pred_check_branch
          %458 = sbr.rel (%p456) target = $region60
        $region59: #{tpu_custom_call.1} parent=47 // pred_region
          %s459 = sand.u32 %s33, 1
          %s460 = scalar_lea.sflag [#allocation6], %s459
          %s461 = sand.u32 %s95, 1
          %s462 = smul.addr %s461, 8
          %s463 = scalar_lea.vmem [#allocation7], %s462
          %465 = vsyncadd %s460, 0
          %s466 = smul.addr %s33, 8
          %s467 = scalar_lea.hbm %s2, %s466
          %s469 = sshll.u32 %s467, 4
          %s470 = int_to_ptr.hbm [resolvable:$true] %s469
          %s471 = sshll.u32 %s463, 4
          %s472 = int_to_ptr.vmem [resolvable:$true] %s471
          %474 = dma.hbm_to_vmem [thread:$0]  %s470, 128, %s472, %s460
        $region60: #{tpu_custom_call.1} parent=47 // pred_fallthru
          _
      $region48: #{tpu_custom_call.1} parent=5 // pred_fallthru
        _
      %p475 = scmp.le.s32.totalorder 1, %s33
      %p476 = scmp.lt.s32.totalorder %s33, 3
      %p477 = pnand %p475, %p476
      %p478 = pneg %p477
      // Predicated region
      $region61: #{tpu_custom_call.1} parent=5 // pred_check
        _
      $region62: #{tpu_custom_call.1} parent=5 // pred_check_branch
        %480 = sbr.rel (%p477) target = $region64
      $region63: #{tpu_custom_call.1} parent=5 // pred_region
        %s481 = ssub.s32 %s33, 1
        %s482 = sand.u32 %s46, 1
        %s483 = scalar_lea.sflag [#allocation3], %s482
        %s484 = sand.u32 %s46, 1
        %s485 = smul.addr %s484, 8
        %s486 = scalar_lea.vmem [#allocation2], %s485
        // Predicated region
        $region65: #{tpu_custom_call.1} parent=63 // pred_check
          %p487 = pneg %p59
        $region66: #{tpu_custom_call.1} parent=63 // pred_check_branch
          %489 = sbr.rel (%p487) target = $region68
        $region67: #{tpu_custom_call.1} parent=63 // pred_region
          %491 = dma.done %s483, 128
        $region68: #{tpu_custom_call.1} parent=63 // pred_fallthru
          _
        %s492 = sand.u32 %s38, 1
        %s493 = scalar_lea.sflag [#allocation6], %s492
        %s494 = sand.u32 %s72, 1
        %s495 = smul.addr %s494, 8
        %s496 = scalar_lea.vmem [#allocation5], %s495
        // Predicated region
        $region69: #{tpu_custom_call.1} parent=63 // pred_check
          %p497 = pneg %p85
        $region70: #{tpu_custom_call.1} parent=63 // pred_check_branch
          %499 = sbr.rel (%p497) target = $region72
        $region71: #{tpu_custom_call.1} parent=63 // pred_region
          %501 = dma.done %s493, 128
        $region72: #{tpu_custom_call.1} parent=63 // pred_fallthru
          _
        %s502 = sand.u32 %s38, 1
        %s503 = scalar_lea.sflag [#allocation6], %s502
        %s504 = sand.u32 %s98, 1
        %s505 = smul.addr %s504, 8
        %s506 = scalar_lea.vmem [#allocation7], %s505
        // Predicated region
        $region73: #{tpu_custom_call.1} parent=63 // pred_check
          %p507 = pneg %p111
        $region74: #{tpu_custom_call.1} parent=63 // pred_check_branch
          %509 = sbr.rel (%p507) target = $region76
        $region75: #{tpu_custom_call.1} parent=63 // pred_region
          %511 = dma.done %s503, 128
        $region76: #{tpu_custom_call.1} parent=63 // pred_fallthru
          _
        // Predicated region
        $region77: #{tpu_custom_call.1} parent=63 // pred_check
          %p512 = pneg %p132
        $region78: #{tpu_custom_call.1} parent=63 // pred_check_branch
          %514 = sbr.rel (%p512) target = $region80
        $region79: #{tpu_custom_call.1} parent=63 // pred_region
          %516 = dma.done [#allocation9], 512
        $region80: #{tpu_custom_call.1} parent=63 // pred_fallthru
          _
        // Predicated region
        $region81: #{tpu_custom_call.1} parent=63 // pred_check
          %p517 = pneg %p153
        $region82: #{tpu_custom_call.1} parent=63 // pred_check_branch
          %519 = sbr.rel (%p517) target = $region84
        $region83: #{tpu_custom_call.1} parent=63 // pred_region
          %521 = dma.done [#allocation9], 512
        $region84: #{tpu_custom_call.1} parent=63 // pred_fallthru
          _
        // Predicated region
        $region85: #{tpu_custom_call.1} parent=63 // pred_check
          %p522 = pneg %p174
        $region86: #{tpu_custom_call.1} parent=63 // pred_check_branch
          %524 = sbr.rel (%p522) target = $region88
        $region87: #{tpu_custom_call.1} parent=63 // pred_region
          %526 = dma.done [#allocation12], 512
        $region88: #{tpu_custom_call.1} parent=63 // pred_fallthru
          _
        // Predicated region
        $region89: #{tpu_custom_call.1} parent=63 // pred_check
          %p527 = pneg %p195
        $region90: #{tpu_custom_call.1} parent=63 // pred_check_branch
          %529 = sbr.rel (%p527) target = $region92
        $region91: #{tpu_custom_call.1} parent=63 // pred_region
          %531 = dma.done [#allocation12], 512
        $region92: #{tpu_custom_call.1} parent=63 // pred_fallthru
          _
        %s532 = sand.u32 %s46, 1
        %s533 = scalar_lea.sflag [#allocation3], %s532
        %s534 = sand.u32 %s46, 1
        %s535 = smul.addr %s534, 8
        %s536 = scalar_lea.vmem [#allocation2], %s535
        %p537 = pneg %p59
        %p538 = pneg %p56
        %s539 = sand.u32 %s38, 1
        %s540 = scalar_lea.sflag [#allocation6], %s539
        %s541 = sand.u32 %s72, 1
        %s542 = smul.addr %s541, 8
        %s543 = scalar_lea.vmem [#allocation5], %s542
        %p544 = pneg %p85
        %p545 = pneg %p82
        %s546 = sand.u32 %s38, 1
        %s547 = scalar_lea.sflag [#allocation6], %s546
        %s548 = sand.u32 %s98, 1
        %s549 = smul.addr %s548, 8
        %s550 = scalar_lea.vmem [#allocation7], %s549
        %p551 = pneg %p111
        %p552 = pneg %p108
        %p553 = pneg %p132
        %p554 = pneg %p129
        %p555 = pneg %p153
        %p556 = pneg %p150
        %p557 = pneg %p174
        %p558 = pneg %p171
        %p559 = pneg %p195
        %p560 = pneg %p192
        %p561 = pneg %p216
        %p562 = pneg %p213
        %p563 = pneg %p237
        %p564 = pneg %p234
        %p565 = pneg %p258
        %p566 = pneg %p255
        %p567 = pneg %p279
        %p568 = pneg %p276
        %p569 = pneg %p305
        %p570 = pneg %p302
        %s571 = sand.u32 %s292, 1
        %s572 = scalar_lea.sflag [#allocation4], %s571
        %s573 = sand.u32 %s292, 1
        %s574 = smul.addr %s573, 8
        %s575 = scalar_lea.vmem [#allocation14], %s574
        %p576 = pneg %p331
        %p577 = pneg %p328
        %s578 = sand.u32 %s318, 1
        %s579 = scalar_lea.sflag [#allocation16], %s578
        %s580 = sand.u32 %s318, 1
        %s581 = smul.addr %s580, 32
        %s582 = scalar_lea.vmem [#allocation15], %s581
        %v583 = vld [vmem:[%s486] sm:$0xff]
        %v584 = vld [vmem:[%s496] sm:$0xff]
        %v585 = vld [vmem:[%s506] sm:$0xff]
        %v586 = vld [vmem:[#allocation8] sm:$0xff]
        %v587 = vld [vmem:[#allocation8 + $0x8] sm:$0xff]
        %v588 = vld [vmem:[#allocation8 + $0x10] sm:$0xff]
        %v589 = vld [vmem:[#allocation8 + $0x18] sm:$0xff]
        %v590 = vld [vmem:[%s7] sm:$0x1]
        %v592 = vperm.slane %v590, 0
        %vm594 = vcmask 261120
        %v596 = vsel %vm594, %v583, 0
        %598 = vmatpush.msra.mxu0 0.0
        %599 = vmatpush.msra.mxu0 0.0
        %600 = vmatpush.msra.mxu0 0.0
        %601 = vmatpush.msra.mxu0 0.0
        %602 = vmatpush.msra.mxu0 0.0
        %603 = vmatpush.msra.mxu0 0.0
        %604 = vmatpush.msra.mxu0 0.0
        %605 = vmatpush.msra.mxu0 0.0
        %606 = vmatpush.msra.mxu0 0.0
        %607 = vmatpush.msra.mxu0 0.0
        %608 = vmatpush.msra.mxu0 0.0
        %609 = vmatpush.msra.mxu0 0.0
        %610 = vmatpush.msra.mxu0 %v589
        %611 = vmatpush.msra.mxu0 %v588
        %612 = vmatpush.msra.mxu0 %v587
        %613 = vmatpush.msra.mxu0 %v586
        %614 = vmatmul.f32.gmra.mxu0 %v596
        %v615 = vpop.f32.mrf.mxu0
        %v616 = vadd.f32 %v592, %v615
        %617 = vdwg.mxu0
        %v618 = vld [vmem:[#allocation10] sm:$0xff]
        %v619 = vld [vmem:[#allocation10 + $0x8] sm:$0xff]
        %v620 = vld [vmem:[#allocation10 + $0x10] sm:$0xff]
        %v621 = vld [vmem:[#allocation10 + $0x18] sm:$0xff]
        %v622 = vld [vmem:[%s8] sm:$0x1]
        %v624 = vperm.slane %v622, 0
        %v627 = vsel %vm594, %v584, 0
        %629 = vmatpush.msra.mxu0 0.0
        %630 = vmatpush.msra.mxu0 0.0
        %631 = vmatpush.msra.mxu0 0.0
        %632 = vmatpush.msra.mxu0 0.0
        %633 = vmatpush.msra.mxu0 0.0
        %634 = vmatpush.msra.mxu0 0.0
        %635 = vmatpush.msra.mxu0 0.0
        %636 = vmatpush.msra.mxu0 0.0
        %637 = vmatpush.msra.mxu0 0.0
        %638 = vmatpush.msra.mxu0 0.0
        %639 = vmatpush.msra.mxu0 0.0
        %640 = vmatpush.msra.mxu0 0.0
        %641 = vmatpush.msra.mxu0 %v621
        %642 = vmatpush.msra.mxu0 %v620
        %643 = vmatpush.msra.mxu0 %v619
        %644 = vmatpush.msra.mxu0 %v618
        %645 = vmatmul.f32.gmra.mxu0 %v627
        %v646 = vpop.f32.mrf.mxu0
        %v647 = vadd.f32 %v624, %v646
        %648 = vdwg.mxu0
        %v649 = vld [vmem:[#allocation11] sm:$0xff]
        %v650 = vld [vmem:[#allocation11 + $0x8] sm:$0xff]
        %v651 = vld [vmem:[#allocation11 + $0x10] sm:$0xff]
        %v652 = vld [vmem:[#allocation11 + $0x18] sm:$0xff]
        %v653 = vld [vmem:[%s9] sm:$0x1]
        %v655 = vperm.slane %v653, 0
        %v658 = vsel %vm594, %v585, 0
        %660 = vmatpush.msra.mxu0 0.0
        %661 = vmatpush.msra.mxu0 0.0
        %662 = vmatpush.msra.mxu0 0.0
        %663 = vmatpush.msra.mxu0 0.0
        %664 = vmatpush.msra.mxu0 0.0
        %665 = vmatpush.msra.mxu0 0.0
        %666 = vmatpush.msra.mxu0 0.0
        %667 = vmatpush.msra.mxu0 0.0
        %668 = vmatpush.msra.mxu0 0.0
        %669 = vmatpush.msra.mxu0 0.0
        %670 = vmatpush.msra.mxu0 0.0
        %671 = vmatpush.msra.mxu0 0.0
        %672 = vmatpush.msra.mxu0 %v652
        %673 = vmatpush.msra.mxu0 %v651
        %674 = vmatpush.msra.mxu0 %v650
        %675 = vmatpush.msra.mxu0 %v649
        %676 = vmatmul.f32.gmra.mxu0 %v658
        %v677 = vpop.f32.mrf.mxu0
        %v678 = vadd.f32 %v655, %v677
        %679 = vdwg.mxu0
        %v680 = vmul.f32 %v616, 0.35355338
        %v681 = vld [vmem:[#allocation13] sm:$0xff]
        %v682 = vld [vmem:[#allocation13 + $0x8] sm:$0xff]
        %v683 = vld [vmem:[#allocation13 + $0x10] sm:$0xff]
        %v684 = vld [vmem:[#allocation13 + $0x18] sm:$0xff]
        %vm685 = vcmask 64512
        %v687 = vsel %vm685, %v680, 0
        %v690 = vsel %vm685, %v647, 0
        %692 = vmatpush.xpose.msra.mxu0 0.0
        %693 = vmatpush.xpose.msra.mxu0 0.0
        %694 = vmatpush.xpose.msra.mxu0 0.0
        %695 = vmatpush.xpose.msra.mxu0 0.0
        %696 = vmatpush.xpose.msra.mxu0 0.0
        %697 = vmatpush.xpose.msra.mxu0 0.0
        %698 = vmatpush.xpose.msra.mxu0 0.0
        %699 = vmatpush.xpose.msra.mxu0 0.0
        %700 = vmatpush.xpose.msra.mxu0 0.0
        %701 = vmatpush.xpose.msra.mxu0 0.0
        %702 = vmatpush.xpose.msra.mxu0 0.0
        %703 = vmatpush.xpose.msra.mxu0 0.0
        %704 = vmatpush.xpose.msra.mxu0 0.0
        %705 = vmatpush.xpose.msra.mxu0 0.0
        %706 = vmatpush.xpose.msra.mxu0 0.0
        %707 = vmatpush.xpose.msra.mxu0 %v690
        %708 = vmatmul.f32.gmra.mxu0 %v687
        %v709 = vpop.f32.mrf.mxu0
        %v710 = vadd.f32 0.0, %v709
        %711 = vdwg.mxu0
        %v712 = vsel %vm685, %v710, -inf
        %713 = vmax.xlane.f32.xlu0 %v712
        %v714 = vpop.xlane.xlu0 %713
        %v715 = vsub.f32 %v710, %v714
        %v716 = vmul.f32 %v715, 1.442695
        %v717 = vpow.pop %v716
        %v718 = vsel %vm685, %v717, 0.0
        %719 = vadd.xlane.f32.xlu0 %v718
        %v720 = vpop.xlane.xlu0 %719
        %v721 = vrcp.pop %v720
        %v722 = vmul.f32 %v720, %v721
        %v723 = vsub.f32 1.0, %v722
        %v724 = vmul.f32 %v721, %v723
        %v725 = vadd.f32 %v721, %v724
        %vm726 = vweird.f32 %v720
        %vm727 = vweird.f32 %v721
        %vm728 = vmor %vm726, %vm727
        %v729 = vsel %vm728, %v721, %v725
        %v730 = vand.u32 2147483647, %v720
        %vm731 = vcmp.eq.f32.partialorder %v730, 8.507059e+37
        %v732 = vand.u32 %v720, 2147483648
        %v733 = vor.u32 1.1754944e-38, %v732
        %v734 = vsel %vm731, %v733, %v729
        %v735 = vmul.f32 %v717, %v734
        %736 = vst.msk [vmem:[%s582] sm:$0xff] %vm685, %v735
        %v738 = vsel %vm685, %v735, 0
        %740 = vmatpush.msra.mxu0 0.0
        %741 = vmatpush.msra.mxu0 0.0
        %742 = vmatpush.msra.mxu0 0.0
        %743 = vmatpush.msra.mxu0 0.0
        %744 = vmatpush.msra.mxu0 0.0
        %745 = vmatpush.msra.mxu0 0.0
        %746 = vmatpush.msra.mxu0 0.0
        %747 = vmatpush.msra.mxu0 0.0
        %748 = vmatpush.msra.mxu0 0.0
        %749 = vmatpush.msra.mxu0 0.0
        %750 = vmatpush.msra.mxu0 0.0
        %751 = vmatpush.msra.mxu0 0.0
        %752 = vmatpush.msra.mxu0 0.0
        %753 = vmatpush.msra.mxu0 0.0
        %754 = vmatpush.msra.mxu0 0.0
        %755 = vmatpush.msra.mxu0 %v678
        %756 = vmatmul.f32.gmra.mxu0 %v738
        %v757 = vpop.f32.mrf.mxu0
        %v758 = vadd.f32 0.0, %v757
        %759 = vdwg.mxu0
        %760 = vrot.lane.b32.xlu0 %v680, 120
        %v761 = vpop.permute.xlu0 %760
        %762 = vrot.lane.b32.xlu0 %v647, 120
        %v763 = vpop.permute.xlu0 %762
        %v764 = vsel %vm685, %v761, 0
        %v766 = vsel %vm685, %v763, 0
        %768 = vmatpush.xpose.msra.mxu0 0.0
        %769 = vmatpush.xpose.msra.mxu0 0.0
        %770 = vmatpush.xpose.msra.mxu0 0.0
        %771 = vmatpush.xpose.msra.mxu0 0.0
        %772 = vmatpush.xpose.msra.mxu0 0.0
        %773 = vmatpush.xpose.msra.mxu0 0.0
        %774 = vmatpush.xpose.msra.mxu0 0.0
        %775 = vmatpush.xpose.msra.mxu0 0.0
        %776 = vmatpush.xpose.msra.mxu0 0.0
        %777 = vmatpush.xpose.msra.mxu0 0.0
        %778 = vmatpush.xpose.msra.mxu0 0.0
        %779 = vmatpush.xpose.msra.mxu0 0.0
        %780 = vmatpush.xpose.msra.mxu0 0.0
        %781 = vmatpush.xpose.msra.mxu0 0.0
        %782 = vmatpush.xpose.msra.mxu0 0.0
        %783 = vmatpush.xpose.msra.mxu0 %v766
        %784 = vmatmul.f32.gmra.mxu0 %v764
        %v785 = vpop.f32.mrf.mxu0
        %v786 = vadd.f32 0.0, %v785
        %787 = vdwg.mxu0
        %v788 = vsel %vm685, %v786, -inf
        %789 = vmax.xlane.f32.xlu0 %v788
        %v790 = vpop.xlane.xlu0 %789
        %v791 = vsub.f32 %v786, %v790
        %v792 = vmul.f32 %v791, 1.442695
        %v793 = vpow.pop %v792
        %v794 = vsel %vm685, %v793, 0.0
        %795 = vadd.xlane.f32.xlu0 %v794
        %v796 = vpop.xlane.xlu0 %795
        %v797 = vrcp.pop %v796
        %v798 = vmul.f32 %v796, %v797
        %v799 = vsub.f32 1.0, %v798
        %v800 = vmul.f32 %v797, %v799
        %v801 = vadd.f32 %v797, %v800
        %vm802 = vweird.f32 %v796
        %vm803 = vweird.f32 %v797
        %vm804 = vmor %vm802, %vm803
        %v805 = vsel %vm804, %v797, %v801
        %v806 = vand.u32 2147483647, %v796
        %vm807 = vcmp.eq.f32.partialorder %v806, 8.507059e+37
        %v808 = vand.u32 %v796, 2147483648
        %v809 = vor.u32 1.1754944e-38, %v808
        %v810 = vsel %vm807, %v809, %v805
        %v811 = vmul.f32 %v793, %v810
        %s812 = scalar_lea.vmem %s582, 8 [#allocation15]
        %813 = vst.msk [vmem:[%s812] sm:$0xff] %vm685, %v811
        %815 = vrot.lane.b32.xlu0 %v678, 120
        %v816 = vpop.permute.xlu0 %815
        %v819 = vsel %vm685, %v811, 0
        %821 = vmatpush.msra.mxu0 0.0
        %822 = vmatpush.msra.mxu0 0.0
        %823 = vmatpush.msra.mxu0 0.0
        %824 = vmatpush.msra.mxu0 0.0
        %825 = vmatpush.msra.mxu0 0.0
        %826 = vmatpush.msra.mxu0 0.0
        %827 = vmatpush.msra.mxu0 0.0
        %828 = vmatpush.msra.mxu0 0.0
        %829 = vmatpush.msra.mxu0 0.0
        %830 = vmatpush.msra.mxu0 0.0
        %831 = vmatpush.msra.mxu0 0.0
        %832 = vmatpush.msra.mxu0 0.0
        %833 = vmatpush.msra.mxu0 0.0
        %834 = vmatpush.msra.mxu0 0.0
        %835 = vmatpush.msra.mxu0 0.0
        %836 = vmatpush.msra.mxu0 %v816
        %837 = vmatmul.f32.gmra.mxu0 %v819
        %v838 = vpop.f32.mrf.mxu0
        %v839 = vadd.f32 0.0, %v838
        %840 = vdwg.mxu0
        %v842 = vsel %vm685, %v839, 0
        %844 = vmatpush.msra.mxu0 0.0
        %845 = vmatpush.msra.mxu0 0.0
        %846 = vmatpush.msra.mxu0 0.0
        %847 = vmatpush.msra.mxu0 0.0
        %848 = vmatpush.msra.mxu0 0.0
        %849 = vmatpush.msra.mxu0 0.0
        %850 = vmatpush.msra.mxu0 0.0
        %851 = vmatpush.msra.mxu0 0.0
        %852 = vmatpush.msra.mxu0 0.0
        %853 = vmatpush.msra.mxu0 0.0
        %854 = vmatpush.msra.mxu0 0.0
        %855 = vmatpush.msra.mxu0 0.0
        %856 = vmatpush.msra.mxu0 0.0
        %857 = vmatpush.msra.mxu0 0.0
        %858 = vmatpush.msra.mxu0 0.0
        %859 = vmatpush.msra.mxu0 %v682
        %860 = vmatmul.f32.gmra.mxu0 %v842
        %v861 = vpop.f32.mrf.mxu0
        %v862 = vadd.f32 0.0, %v861
        %863 = vdwg.mxu0
        %v865 = vsel %vm685, %v758, 0
        %867 = vmatpush.msra.mxu0 0.0
        %868 = vmatpush.msra.mxu0 0.0
        %869 = vmatpush.msra.mxu0 0.0
        %870 = vmatpush.msra.mxu0 0.0
        %871 = vmatpush.msra.mxu0 0.0
        %872 = vmatpush.msra.mxu0 0.0
        %873 = vmatpush.msra.mxu0 0.0
        %874 = vmatpush.msra.mxu0 0.0
        %875 = vmatpush.msra.mxu0 0.0
        %876 = vmatpush.msra.mxu0 0.0
        %877 = vmatpush.msra.mxu0 0.0
        %878 = vmatpush.msra.mxu0 0.0
        %879 = vmatpush.msra.mxu0 0.0
        %880 = vmatpush.msra.mxu0 0.0
        %881 = vmatpush.msra.mxu0 0.0
        %882 = vmatpush.msra.mxu0 %v681
        %883 = vmatmul.f32.gmra.mxu0 %v865
        %v884 = vpop.f32.mrf.mxu0
        %v885 = vadd.f32 %v862, %v884
        %886 = vdwg.mxu0
        %887 = vrot.lane.b32.xlu0 %v680, 112
        %v888 = vpop.permute.xlu0 %887
        %889 = vrot.lane.b32.xlu0 %v647, 112
        %v890 = vpop.permute.xlu0 %889
        %v891 = vsel %vm685, %v888, 0
        %v893 = vsel %vm685, %v890, 0
        %895 = vmatpush.xpose.msra.mxu0 0.0
        %896 = vmatpush.xpose.msra.mxu0 0.0
        %897 = vmatpush.xpose.msra.mxu0 0.0
        %898 = vmatpush.xpose.msra.mxu0 0.0
        %899 = vmatpush.xpose.msra.mxu0 0.0
        %900 = vmatpush.xpose.msra.mxu0 0.0
        %901 = vmatpush.xpose.msra.mxu0 0.0
        %902 = vmatpush.xpose.msra.mxu0 0.0
        %903 = vmatpush.xpose.msra.mxu0 0.0
        %904 = vmatpush.xpose.msra.mxu0 0.0
        %905 = vmatpush.xpose.msra.mxu0 0.0
        %906 = vmatpush.xpose.msra.mxu0 0.0
        %907 = vmatpush.xpose.msra.mxu0 0.0
        %908 = vmatpush.xpose.msra.mxu0 0.0
        %909 = vmatpush.xpose.msra.mxu0 0.0
        %910 = vmatpush.xpose.msra.mxu0 %v893
        %911 = vmatmul.f32.gmra.mxu0 %v891
        %v912 = vpop.f32.mrf.mxu0
        %v913 = vadd.f32 0.0, %v912
        %914 = vdwg.mxu0
        %v915 = vsel %vm685, %v913, -inf
        %916 = vmax.xlane.f32.xlu0 %v915
        %v917 = vpop.xlane.xlu0 %916
        %v918 = vsub.f32 %v913, %v917
        %v919 = vmul.f32 %v918, 1.442695
        %v920 = vpow.pop %v919
        %v921 = vsel %vm685, %v920, 0.0
        %922 = vadd.xlane.f32.xlu0 %v921
        %v923 = vpop.xlane.xlu0 %922
        %v924 = vrcp.pop %v923
        %v925 = vmul.f32 %v923, %v924
        %v926 = vsub.f32 1.0, %v925
        %v927 = vmul.f32 %v924, %v926
        %v928 = vadd.f32 %v924, %v927
        %vm929 = vweird.f32 %v923
        %vm930 = vweird.f32 %v924
        %vm931 = vmor %vm929, %vm930
        %v932 = vsel %vm931, %v924, %v928
        %v933 = vand.u32 2147483647, %v923
        %vm934 = vcmp.eq.f32.partialorder %v933, 8.507059e+37
        %v935 = vand.u32 %v923, 2147483648
        %v936 = vor.u32 1.1754944e-38, %v935
        %v937 = vsel %vm934, %v936, %v932
        %v938 = vmul.f32 %v920, %v937
        %s939 = scalar_lea.vmem %s582, 16 [#allocation15]
        %940 = vst.msk [vmem:[%s939] sm:$0xff] %vm685, %v938
        %941 = vrot.lane.b32.xlu0 %v678, 112
        %v942 = vpop.permute.xlu0 %941
        %v945 = vsel %vm685, %v938, 0
        %947 = vmatpush.msra.mxu0 0.0
        %948 = vmatpush.msra.mxu0 0.0
        %949 = vmatpush.msra.mxu0 0.0
        %950 = vmatpush.msra.mxu0 0.0
        %951 = vmatpush.msra.mxu0 0.0
        %952 = vmatpush.msra.mxu0 0.0
        %953 = vmatpush.msra.mxu0 0.0
        %954 = vmatpush.msra.mxu0 0.0
        %955 = vmatpush.msra.mxu0 0.0
        %956 = vmatpush.msra.mxu0 0.0
        %957 = vmatpush.msra.mxu0 0.0
        %958 = vmatpush.msra.mxu0 0.0
        %959 = vmatpush.msra.mxu0 0.0
        %960 = vmatpush.msra.mxu0 0.0
        %961 = vmatpush.msra.mxu0 0.0
        %962 = vmatpush.msra.mxu0 %v942
        %963 = vmatmul.f32.gmra.mxu0 %v945
        %v964 = vpop.f32.mrf.mxu0
        %v965 = vadd.f32 0.0, %v964
        %966 = vdwg.mxu0
        %v968 = vsel %vm685, %v965, 0
        %970 = vmatpush.msra.mxu0 0.0
        %971 = vmatpush.msra.mxu0 0.0
        %972 = vmatpush.msra.mxu0 0.0
        %973 = vmatpush.msra.mxu0 0.0
        %974 = vmatpush.msra.mxu0 0.0
        %975 = vmatpush.msra.mxu0 0.0
        %976 = vmatpush.msra.mxu0 0.0
        %977 = vmatpush.msra.mxu0 0.0
        %978 = vmatpush.msra.mxu0 0.0
        %979 = vmatpush.msra.mxu0 0.0
        %980 = vmatpush.msra.mxu0 0.0
        %981 = vmatpush.msra.mxu0 0.0
        %982 = vmatpush.msra.mxu0 0.0
        %983 = vmatpush.msra.mxu0 0.0
        %984 = vmatpush.msra.mxu0 0.0
        %985 = vmatpush.msra.mxu0 %v683
        %986 = vmatmul.f32.gmra.mxu0 %v968
        %v987 = vpop.f32.mrf.mxu0
        %v988 = vadd.f32 0.0, %v987
        %989 = vdwg.mxu0
        %v990 = vadd.f32 %v885, %v988
        %991 = vrot.lane.b32.xlu0 %v680, 104
        %v992 = vpop.permute.xlu0 %991
        %993 = vrot.lane.b32.xlu0 %v647, 104
        %v994 = vpop.permute.xlu0 %993
        %v995 = vsel %vm685, %v992, 0
        %v997 = vsel %vm685, %v994, 0
        %999 = vmatpush.xpose.msra.mxu0 0.0
        %1000 = vmatpush.xpose.msra.mxu0 0.0
        %1001 = vmatpush.xpose.msra.mxu0 0.0
        %1002 = vmatpush.xpose.msra.mxu0 0.0
        %1003 = vmatpush.xpose.msra.mxu0 0.0
        %1004 = vmatpush.xpose.msra.mxu0 0.0
        %1005 = vmatpush.xpose.msra.mxu0 0.0
        %1006 = vmatpush.xpose.msra.mxu0 0.0
        %1007 = vmatpush.xpose.msra.mxu0 0.0
        %1008 = vmatpush.xpose.msra.mxu0 0.0
        %1009 = vmatpush.xpose.msra.mxu0 0.0
        %1010 = vmatpush.xpose.msra.mxu0 0.0
        %1011 = vmatpush.xpose.msra.mxu0 0.0
        %1012 = vmatpush.xpose.msra.mxu0 0.0
        %1013 = vmatpush.xpose.msra.mxu0 0.0
        %1014 = vmatpush.xpose.msra.mxu0 %v997
        %1015 = vmatmul.f32.gmra.mxu0 %v995
        %v1016 = vpop.f32.mrf.mxu0
        %v1017 = vadd.f32 0.0, %v1016
        %1018 = vdwg.mxu0
        %v1019 = vsel %vm685, %v1017, -inf
        %1020 = vmax.xlane.f32.xlu0 %v1019
        %v1021 = vpop.xlane.xlu0 %1020
        %v1022 = vsub.f32 %v1017, %v1021
        %v1023 = vmul.f32 %v1022, 1.442695
        %v1024 = vpow.pop %v1023
        %v1025 = vsel %vm685, %v1024, 0.0
        %1026 = vadd.xlane.f32.xlu0 %v1025
        %v1027 = vpop.xlane.xlu0 %1026
        %v1028 = vrcp.pop %v1027
        %v1029 = vmul.f32 %v1027, %v1028
        %v1030 = vsub.f32 1.0, %v1029
        %v1031 = vmul.f32 %v1028, %v1030
        %v1032 = vadd.f32 %v1028, %v1031
        %vm1033 = vweird.f32 %v1027
        %vm1034 = vweird.f32 %v1028
        %vm1035 = vmor %vm1033, %vm1034
        %v1036 = vsel %vm1035, %v1028, %v1032
        %v1037 = vand.u32 2147483647, %v1027
        %vm1038 = vcmp.eq.f32.partialorder %v1037, 8.507059e+37
        %v1039 = vand.u32 %v1027, 2147483648
        %v1040 = vor.u32 1.1754944e-38, %v1039
        %v1041 = vsel %vm1038, %v1040, %v1036
        %v1042 = vmul.f32 %v1024, %v1041
        %s1043 = scalar_lea.vmem %s582, 24 [#allocation15]
        %1044 = vst.msk [vmem:[%s1043] sm:$0xff] %vm685, %v1042
        %1045 = vrot.lane.b32.xlu0 %v678, 104
        %v1046 = vpop.permute.xlu0 %1045
        %v1049 = vsel %vm685, %v1042, 0
        %1051 = vmatpush.msra.mxu0 0.0
        %1052 = vmatpush.msra.mxu0 0.0
        %1053 = vmatpush.msra.mxu0 0.0
        %1054 = vmatpush.msra.mxu0 0.0
        %1055 = vmatpush.msra.mxu0 0.0
        %1056 = vmatpush.msra.mxu0 0.0
        %1057 = vmatpush.msra.mxu0 0.0
        %1058 = vmatpush.msra.mxu0 0.0
        %1059 = vmatpush.msra.mxu0 0.0
        %1060 = vmatpush.msra.mxu0 0.0
        %1061 = vmatpush.msra.mxu0 0.0
        %1062 = vmatpush.msra.mxu0 0.0
        %1063 = vmatpush.msra.mxu0 0.0
        %1064 = vmatpush.msra.mxu0 0.0
        %1065 = vmatpush.msra.mxu0 0.0
        %1066 = vmatpush.msra.mxu0 %v1046
        %1067 = vmatmul.f32.gmra.mxu0 %v1049
        %v1068 = vpop.f32.mrf.mxu0
        %v1069 = vadd.f32 0.0, %v1068
        %1070 = vdwg.mxu0
        %v1072 = vsel %vm685, %v1069, 0
        %1074 = vmatpush.msra.mxu0 0.0
        %1075 = vmatpush.msra.mxu0 0.0
        %1076 = vmatpush.msra.mxu0 0.0
        %1077 = vmatpush.msra.mxu0 0.0
        %1078 = vmatpush.msra.mxu0 0.0
        %1079 = vmatpush.msra.mxu0 0.0
        %1080 = vmatpush.msra.mxu0 0.0
        %1081 = vmatpush.msra.mxu0 0.0
        %1082 = vmatpush.msra.mxu0 0.0
        %1083 = vmatpush.msra.mxu0 0.0
        %1084 = vmatpush.msra.mxu0 0.0
        %1085 = vmatpush.msra.mxu0 0.0
        %1086 = vmatpush.msra.mxu0 0.0
        %1087 = vmatpush.msra.mxu0 0.0
        %1088 = vmatpush.msra.mxu0 0.0
        %1089 = vmatpush.msra.mxu0 %v684
        %1090 = vmatmul.f32.gmra.mxu0 %v1072
        %v1091 = vpop.f32.mrf.mxu0
        %v1092 = vadd.f32 0.0, %v1091
        %1093 = vdwg.mxu0
        %v1094 = vadd.f32 %v990, %v1092
        %v1095 = vld [vmem:[%s10] sm:$0x1]
        %v1097 = vperm.slane %v1095, 0
        %v1099 = vadd.f32 %v1094, %v1097
        %1100 = vst.msk [vmem:[%s575] sm:$0xff] %vm594, %v1099
        %s1101 = sand.u32 %s292, 1
        %s1102 = scalar_lea.sflag [#allocation4], %s1101
        %s1103 = sand.u32 %s292, 1
        %s1104 = smul.addr %s1103, 8
        %s1105 = scalar_lea.vmem [#allocation14], %s1104
        %s1106 = sand.u32 %s318, 1
        %s1107 = scalar_lea.sflag [#allocation16], %s1106
        %s1108 = sand.u32 %s318, 1
        %s1109 = smul.addr %s1108, 32
        %s1110 = scalar_lea.vmem [#allocation15], %s1109
        // Predicated region
        $region93: #{tpu_custom_call.1} parent=63 // pred_check
          %p1111 = pneg %p302
        $region94: #{tpu_custom_call.1} parent=63 // pred_check_branch
          %1113 = sbr.rel (%p1111) target = $region96
        $region95: #{tpu_custom_call.1} parent=63 // pred_region
          %1115 = vsyncadd %s1102, 0
          %s1116 = smul.addr %s38, 8
          %s1117 = scalar_lea.hbm %s11, %s1116
          %s1119 = sshll.u32 %s1105, 4
          %s1120 = int_to_ptr.vmem [resolvable:$true] %s1119
          %s1121 = sshll.u32 %s1117, 4
          %s1122 = int_to_ptr.hbm [resolvable:$true] %s1121
          %1124 = dma.vmem_to_hbm [thread:$0]  %s1120, 128, %s1122, %s1102
        $region96: #{tpu_custom_call.1} parent=63 // pred_fallthru
          _
        // Predicated region
        $region97: #{tpu_custom_call.1} parent=63 // pred_check
          %p1125 = pneg %p328
        $region98: #{tpu_custom_call.1} parent=63 // pred_check_branch
          %1127 = sbr.rel (%p1125) target = $region100
        $region99: #{tpu_custom_call.1} parent=63 // pred_region
          %1129 = vsyncadd %s1107, 0
          %s1130 = smul.addr %s38, 4
          %s1131 = smul.addr %s1130, 8
          %s1132 = scalar_lea.hbm %s12, %s1131
          %s1133 = sshll.u32 %s1110, 4
          %s1134 = int_to_ptr.vmem [resolvable:$true] %s1133
          %s1135 = sshll.u32 %s1132, 4
          %s1136 = int_to_ptr.hbm [resolvable:$true] %s1135
          %1141 = dma.vmem_to_hbm [thread:$0]  %s1134, 512, %s1136, %s1107, 128, 128, 8
        $region100: #{tpu_custom_call.1} parent=63 // pred_fallthru
          _
      $region64: #{tpu_custom_call.1} parent=5 // pred_fallthru
        _
      %p1142 = scmp.le.s32.totalorder 2, %s33
      // Predicated region
      $region101: #{tpu_custom_call.1} parent=5 // pred_check
        %p1143 = pneg %p1142
      $region102: #{tpu_custom_call.1} parent=5 // pred_check_branch
        %1145 = sbr.rel (%p1143) target = $region104
      $region103: #{tpu_custom_call.1} parent=5 // pred_region
        %s1146 = ssub.s32 %s33, 2
        // Predicated region
        $region105: #{tpu_custom_call.1} parent=103 // pred_check
          %p1147 = pneg %p308
        $region106: #{tpu_custom_call.1} parent=103 // pred_check_branch
          %1149 = sbr.rel (%p1147) target = $region108
        $region107: #{tpu_custom_call.1} parent=103 // pred_region
          %s1150 = sand.u32 %s293, 1
          %s1151 = scalar_lea.sflag [#allocation4], %s1150
          %s1152 = sand.u32 %s293, 1
          %s1153 = smul.addr %s1152, 8
          %s1154 = scalar_lea.vmem [#allocation14], %s1153
          %1156 = dma.done %s1151, 128
        $region108: #{tpu_custom_call.1} parent=103 // pred_fallthru
          _
        // Predicated region
        $region109: #{tpu_custom_call.1} parent=103 // pred_check
          %p1157 = pneg %p334
        $region110: #{tpu_custom_call.1} parent=103 // pred_check_branch
          %1159 = sbr.rel (%p1157) target = $region112
        $region111: #{tpu_custom_call.1} parent=103 // pred_region
          %s1160 = sand.u32 %s319, 1
          %s1161 = scalar_lea.sflag [#allocation16], %s1160
          %s1162 = sand.u32 %s319, 1
          %s1163 = smul.addr %s1162, 32
          %s1164 = scalar_lea.vmem [#allocation15], %s1163
          %1166 = dma.done %s1161, 512
        $region112: #{tpu_custom_call.1} parent=103 // pred_fallthru
          _
      $region104: #{tpu_custom_call.1} parent=5 // pred_fallthru
        _
    $region6: #{tpu_custom_call.1} parent=1 // loop_footer
      %s37 = sadd.s32 1, %s33
    $region7: #{tpu_custom_call.1} parent=1 // loop_footer_branch
      %32 = sbr.rel target = $region3
    $region8: #{tpu_custom_call.1} parent=1 // loop_exit
      _
    %1167 = vsyncpa [#allocation3], 1
    %s1168 = scalar_lea.sflag [#allocation3], 1
    %1169 = vsyncpa %s1168, 1
    %1170 = vsyncpa [#allocation6], 1
    %s1171 = scalar_lea.sflag [#allocation6], 1
    %1172 = vsyncpa %s1171, 1
    %1173 = vsyncpa [#allocation9], 1
    %1174 = vsyncpa [#allocation12], 1
    %1175 = vsyncpa [#allocation4], 1
    %s1176 = scalar_lea.sflag [#allocation4], 1
    %1177 = vsyncpa %s1176, 1
    %1178 = vsyncpa [#allocation16], 1
    %s1179 = scalar_lea.sflag [#allocation16], 1
    %1180 = vsyncpa %s1179, 1

</llo_original>
